<compile_context>
chip_gen: v5e
topology: v5e:2x2
jax: 0.10.0
libtpu: 0.0.40
codegen_flags: <defaults>
</compile_context>

<pallas_src>
import jax
import jax.numpy as jnp
from jax import lax
from jax.experimental import pallas as pl
from jax.experimental.pallas import tpu as pltpu

# ---- problem sizes (small, consistent with the module) ----
B, H, W = 2, 16, 16
HW = H * W                     # 256 lanes (multiple of 128 -> lane-dense)
C_IN = 4                       # in_dim
C_MID = 4                      # cfg.spp_inter_dim
C_OUT = 8                      # cfg.spp_out_dim
K = 5                          # cfg.spp_pooling_size
PAD = K // 2
SLAB = B * C_MID               # pooled slab rows (batch stacked on sublanes)
W_SHIFT = W.bit_length() - 1   # log2(W)


def _silu(v):
    # Exact SiLU (v * sigmoid(v)); kept exact so the 1e-5 check vs the JAX
    # reference holds (pl.reciprocal(..., approx=True) would also be valid).
    return v * (1.0 / (1.0 + jnp.exp(-v)))


def sppelan_kernel(x_ref, w1t_ref, b1t_ref, w2t_ref, b2t_ref, o_ref):
    # x_ref:   (B, C_IN, HW)    channel-major, lane axis = flattened H*W
    # w1t_ref: (C_MID, C_IN)    conv1 weight, PyTorch (O, I) layout (BN folded)
    # b1t_ref: (C_MID, 1)
    # w2t_ref: (C_OUT, 4*C_MID) conv2 weight
    # b2t_ref: (C_OUT, 1)
    # o_ref:   (B, C_OUT, HW)
    w1t = w1t_ref[...]
    b1t = b1t_ref[...]
    w2t = w2t_ref[...]
    b2t = b2t_ref[...]

    # Hoisted broadcasts / weight-column slices (reused across the batch loop).
    b1_full = jnp.broadcast_to(b1t, (C_MID, HW))
    b2_full = jnp.broadcast_to(b2t, (C_OUT, HW))
    w1_cols = [w1t[:, c:c + 1] for c in range(C_IN)]            # each (C_MID, 1)
    w2_cols = [w2t[:, c:c + 1] for c in range(4 * C_MID)]       # each (C_OUT, 1)

    # ---- conv1 (1x1, BN-folded) + SiLU as VPU outer-product FMAs ----
    y1_parts = []
    for b in range(B):
        xb = x_ref[b].astype(jnp.float32)                       # (C_IN, HW)
        acc = b1_full
        for ci in range(C_IN):
            acc = acc + w1_cols[ci] * xb[ci:ci + 1, :]
        y1_parts.append(_silu(acc))
    y1 = jnp.concatenate(y1_parts, axis=0)                      # (SLAB, HW)

    # ---- out-of-bounds masks for the separable 5x5/s1/p2 max pool ----
    lane = lax.broadcasted_iota(jnp.int32, (SLAB, HW), 1)
    w_pos = jnp.bitwise_and(lane, W - 1)                        # lane % W
    h_pos = jnp.right_shift(lane, W_SHIFT)                      # lane // W
    offs = [d for d in range(-PAD, PAD + 1) if d != 0]
    w_ok = {d: jnp.logical_and(w_pos + d >= 0, w_pos + d < W) for d in offs}
    h_ok = {d: jnp.logical_and(h_pos + d >= 0, h_pos + d < H) for d in offs}
    neg_inf = jnp.float32(-jnp.inf)

    def pool5(y):
        # 1x5 max along w (within an image row) ...
        r = y
        for d in offs:
            nb = pltpu.roll(y, shift=(-d) % HW, axis=1)         # nb[l] = y[l + d]
            r = jnp.maximum(r, jnp.where(w_ok[d], nb, neg_inf))
        # ... then 5x1 max along h (rows are W lanes apart).
        p = r
        for d in offs:
            nb = pltpu.roll(r, shift=(-d * W) % HW, axis=1)     # nb[l] = r[l + d*W]
            p = jnp.maximum(p, jnp.where(h_ok[d], nb, neg_inf))
        return p

    y2 = pool5(y1)
    y3 = pool5(y2)
    y4 = pool5(y3)

    # ---- conv2 (1x1 over the virtual concat [y1,y2,y3,y4]) + SiLU ----
    for b in range(B):
        acc = b2_full
        for g, yg in enumerate((y1, y2, y3, y4)):
            for ci in range(C_MID):
                col = g * C_MID + ci                             # concat channel index
                row = b * C_MID + ci                             # slab row for batch b
                acc = acc + w2_cols[col] * yg[row:row + 1, :]
        o_ref[b] = _silu(acc).astype(o_ref.dtype)


@jax.jit
def sppelan_forward(x_nchw, w1t, b1t, w2t, b2t):
    # NCHW -> (B, C, H*W): contiguous reshape, lane-dense last dim (256).
    x_cm = x_nchw.reshape(B, C_IN, HW)
    out = pl.pallas_call(
        sppelan_kernel,
        out_shape=jax.ShapeDtypeStruct((B, C_OUT, HW), jnp.float32),
        in_specs=[
            pl.BlockSpec(memory_space=pltpu.MemorySpace.VMEM),   # x
            pl.BlockSpec(memory_space=pltpu.MemorySpace.VMEM),   # w1t
            pl.BlockSpec(memory_space=pltpu.MemorySpace.VMEM),   # b1t
            pl.BlockSpec(memory_space=pltpu.MemorySpace.VMEM),   # w2t
            pl.BlockSpec(memory_space=pltpu.MemorySpace.VMEM),   # b2t
        ],
        out_specs=pl.BlockSpec(memory_space=pltpu.MemorySpace.VMEM),
    )(x_cm, w1t, b1t, w2t, b2t)
    return out.reshape(B, C_OUT, H, W)


def reference_forward(x_nchw, w1t, b1t, w2t, b2t):
    """Pure-JAX reference (NCHW) for validation."""
    y1 = _silu(jnp.einsum("bchw,oc->bohw", x_nchw, w1t) + b1t.reshape(1, C_MID, 1, 1))

    def pool(t):
        return lax.reduce_window(
            t, -jnp.inf, lax.max,
            window_dimensions=(1, 1, K, K),
            window_strides=(1, 1, 1, 1),
            padding=[(0, 0), (0, 0), (PAD, PAD), (PAD, PAD)],
        )

    y2 = pool(y1)
    y3 = pool(y2)
    y4 = pool(y3)
    cat = jnp.concatenate([y1, y2, y3, y4], axis=1)
    return _silu(jnp.einsum("bchw,oc->bohw", cat, w2t) + b2t.reshape(1, C_OUT, 1, 1))


def init_params(key):
    """Deterministic synthetic init, PyTorch (O, I) layout for the 1x1 convs.
    BN (gamma=1, beta=0, mean=0, var=1) folds to identity, so these weights/biases
    already represent Conv+BN."""
    k1, k2, k3, k4 = jax.random.split(key, 4)
    bound1 = 1.0 / jnp.sqrt(C_IN)
    bound2 = 1.0 / jnp.sqrt(4 * C_MID)
    w1t = jax.random.uniform(k1, (C_MID, C_IN), jnp.float32, -bound1, bound1)
    b1t = jax.random.uniform(k2, (C_MID, 1), jnp.float32, -bound1, bound1)
    w2t = jax.random.uniform(k3, (C_OUT, 4 * C_MID), jnp.float32, -bound2, bound2)
    b2t = jax.random.uniform(k4, (C_OUT, 1), jnp.float32, -bound2, bound2)
    return w1t, b1t, w2t, b2t


if __name__ == "__main__":
    key = jax.random.PRNGKey(0)
    kx, kp = jax.random.split(key)
    x = jax.random.normal(kx, (B, C_IN, H, W), jnp.float32)   # NCHW, like PyTorch
    w1t, b1t, w2t, b2t = init_params(kp)

    out = jax.block_until_ready(sppelan_forward(x, w1t, b1t, w2t, b2t))

    ref = reference_forward(x, w1t, b1t, w2t, b2t)
    assert out.shape == (B, C_OUT, H, W)
    assert jnp.allclose(out, ref, rtol=1e-5, atol=1e-5), "mismatch vs reference"

    print("KERNEL_OK")
</pallas_src>

<mosaic_0001>
module attributes {stable_mosaic.version = 11 : i64} {
  func.func @sppelan_kernel(%arg0: memref<2x4x256xf32, #tpu.memory_space<vmem>>, %arg1: memref<4x4xf32, #tpu.memory_space<vmem>>, %arg2: memref<4x1xf32, #tpu.memory_space<vmem>>, %arg3: memref<8x16xf32, #tpu.memory_space<vmem>>, %arg4: memref<8x1xf32, #tpu.memory_space<vmem>>, %arg5: memref<2x8x256xf32, #tpu.memory_space<vmem>>) attributes {dimension_semantics = [], scalar_prefetch = 0 : i64, scratch_operands = 0 : i64, tpu.core_type = #tpu.core_type<tc>} {
    %c0 = arith.constant 0 : index
    %c0_0 = arith.constant 0 : index
    %0 = vector.load %arg1[%c0, %c0_0] : memref<4x4xf32, #tpu.memory_space<vmem>>, vector<4x4xf32>
    %c0_1 = arith.constant 0 : index
    %c0_2 = arith.constant 0 : index
    %1 = vector.load %arg2[%c0_1, %c0_2] : memref<4x1xf32, #tpu.memory_space<vmem>>, vector<4x1xf32>
    %c0_3 = arith.constant 0 : index
    %c0_4 = arith.constant 0 : index
    %2 = vector.load %arg3[%c0_3, %c0_4] : memref<8x16xf32, #tpu.memory_space<vmem>>, vector<8x16xf32>
    %c0_5 = arith.constant 0 : index
    %c0_6 = arith.constant 0 : index
    %3 = vector.load %arg4[%c0_5, %c0_6] : memref<8x1xf32, #tpu.memory_space<vmem>>, vector<8x1xf32>
    %4 = vector.shape_cast %1 : vector<4x1xf32> to vector<4x1xf32>
    %5 = vector.broadcast %4 : vector<4x1xf32> to vector<4x256xf32>
    %6 = vector.shape_cast %3 : vector<8x1xf32> to vector<8x1xf32>
    %7 = vector.broadcast %6 : vector<8x1xf32> to vector<8x256xf32>
    %8 = vector.extract_strided_slice %0 {offsets = [0, 0], sizes = [4, 1], strides = [1, 1]} : vector<4x4xf32> to vector<4x1xf32>
    %9 = vector.extract_strided_slice %0 {offsets = [0, 1], sizes = [4, 1], strides = [1, 1]} : vector<4x4xf32> to vector<4x1xf32>
    %10 = vector.extract_strided_slice %0 {offsets = [0, 2], sizes = [4, 1], strides = [1, 1]} : vector<4x4xf32> to vector<4x1xf32>
    %11 = vector.extract_strided_slice %0 {offsets = [0, 3], sizes = [4, 1], strides = [1, 1]} : vector<4x4xf32> to vector<4x1xf32>
    %12 = vector.extract_strided_slice %2 {offsets = [0, 0], sizes = [8, 1], strides = [1, 1]} : vector<8x16xf32> to vector<8x1xf32>
    %13 = vector.extract_strided_slice %2 {offsets = [0, 1], sizes = [8, 1], strides = [1, 1]} : vector<8x16xf32> to vector<8x1xf32>
    %14 = vector.extract_strided_slice %2 {offsets = [0, 2], sizes = [8, 1], strides = [1, 1]} : vector<8x16xf32> to vector<8x1xf32>
    %15 = vector.extract_strided_slice %2 {offsets = [0, 3], sizes = [8, 1], strides = [1, 1]} : vector<8x16xf32> to vector<8x1xf32>
    %16 = vector.extract_strided_slice %2 {offsets = [0, 4], sizes = [8, 1], strides = [1, 1]} : vector<8x16xf32> to vector<8x1xf32>
    %17 = vector.extract_strided_slice %2 {offsets = [0, 5], sizes = [8, 1], strides = [1, 1]} : vector<8x16xf32> to vector<8x1xf32>
    %18 = vector.extract_strided_slice %2 {offsets = [0, 6], sizes = [8, 1], strides = [1, 1]} : vector<8x16xf32> to vector<8x1xf32>
    %19 = vector.extract_strided_slice %2 {offsets = [0, 7], sizes = [8, 1], strides = [1, 1]} : vector<8x16xf32> to vector<8x1xf32>
    %20 = vector.extract_strided_slice %2 {offsets = [0, 8], sizes = [8, 1], strides = [1, 1]} : vector<8x16xf32> to vector<8x1xf32>
    %21 = vector.extract_strided_slice %2 {offsets = [0, 9], sizes = [8, 1], strides = [1, 1]} : vector<8x16xf32> to vector<8x1xf32>
    %22 = vector.extract_strided_slice %2 {offsets = [0, 10], sizes = [8, 1], strides = [1, 1]} : vector<8x16xf32> to vector<8x1xf32>
    %23 = vector.extract_strided_slice %2 {offsets = [0, 11], sizes = [8, 1], strides = [1, 1]} : vector<8x16xf32> to vector<8x1xf32>
    %24 = vector.extract_strided_slice %2 {offsets = [0, 12], sizes = [8, 1], strides = [1, 1]} : vector<8x16xf32> to vector<8x1xf32>
    %25 = vector.extract_strided_slice %2 {offsets = [0, 13], sizes = [8, 1], strides = [1, 1]} : vector<8x16xf32> to vector<8x1xf32>
    %26 = vector.extract_strided_slice %2 {offsets = [0, 14], sizes = [8, 1], strides = [1, 1]} : vector<8x16xf32> to vector<8x1xf32>
    %27 = vector.extract_strided_slice %2 {offsets = [0, 15], sizes = [8, 1], strides = [1, 1]} : vector<8x16xf32> to vector<8x1xf32>
    %c0_7 = arith.constant 0 : index
    %c0_8 = arith.constant 0 : index
    %c0_9 = arith.constant 0 : index
    %28 = vector.load %arg0[%c0_7, %c0_8, %c0_9] : memref<2x4x256xf32, #tpu.memory_space<vmem>>, vector<1x4x256xf32>
    %29 = vector.shape_cast %28 : vector<1x4x256xf32> to vector<4x256xf32>
    %30 = vector.extract_strided_slice %29 {offsets = [0, 0], sizes = [1, 256], strides = [1, 1]} : vector<4x256xf32> to vector<1x256xf32>
    %31 = vector.broadcast %8 : vector<4x1xf32> to vector<4x256xf32>
    %32 = vector.broadcast %30 : vector<1x256xf32> to vector<4x256xf32>
    %33 = arith.mulf %31, %32 : vector<4x256xf32>
    %34 = arith.addf %5, %33 : vector<4x256xf32>
    %35 = vector.extract_strided_slice %29 {offsets = [1, 0], sizes = [1, 256], strides = [1, 1]} : vector<4x256xf32> to vector<1x256xf32>
    %36 = vector.broadcast %9 : vector<4x1xf32> to vector<4x256xf32>
    %37 = vector.broadcast %35 : vector<1x256xf32> to vector<4x256xf32>
    %38 = arith.mulf %36, %37 : vector<4x256xf32>
    %39 = arith.addf %34, %38 : vector<4x256xf32>
    %40 = vector.extract_strided_slice %29 {offsets = [2, 0], sizes = [1, 256], strides = [1, 1]} : vector<4x256xf32> to vector<1x256xf32>
    %41 = vector.broadcast %10 : vector<4x1xf32> to vector<4x256xf32>
    %42 = vector.broadcast %40 : vector<1x256xf32> to vector<4x256xf32>
    %43 = arith.mulf %41, %42 : vector<4x256xf32>
    %44 = arith.addf %39, %43 : vector<4x256xf32>
    %45 = vector.extract_strided_slice %29 {offsets = [3, 0], sizes = [1, 256], strides = [1, 1]} : vector<4x256xf32> to vector<1x256xf32>
    %46 = vector.broadcast %11 : vector<4x1xf32> to vector<4x256xf32>
    %47 = vector.broadcast %45 : vector<1x256xf32> to vector<4x256xf32>
    %48 = arith.mulf %46, %47 : vector<4x256xf32>
    %49 = arith.addf %44, %48 : vector<4x256xf32>
    %cst = arith.constant 0.000000e+00 : f32
    %50 = vector.broadcast %cst : f32 to vector<4x256xf32>
    %51 = arith.subf %50, %49 : vector<4x256xf32>
    %52 = math.exp %51 : vector<4x256xf32>
    %cst_10 = arith.constant 1.000000e+00 : f32
    %53 = vector.broadcast %cst_10 : f32 to vector<4x256xf32>
    %54 = arith.addf %53, %52 : vector<4x256xf32>
    %cst_11 = arith.constant 1.000000e+00 : f32
    %55 = vector.broadcast %cst_11 : f32 to vector<4x256xf32>
    %56 = arith.divf %55, %54 : vector<4x256xf32>
    %57 = arith.mulf %49, %56 : vector<4x256xf32>
    %c1 = arith.constant 1 : index
    %c0_12 = arith.constant 0 : index
    %c0_13 = arith.constant 0 : index
    %58 = vector.load %arg0[%c1, %c0_12, %c0_13] : memref<2x4x256xf32, #tpu.memory_space<vmem>>, vector<1x4x256xf32>
    %59 = vector.shape_cast %58 : vector<1x4x256xf32> to vector<4x256xf32>
    %60 = vector.extract_strided_slice %59 {offsets = [0, 0], sizes = [1, 256], strides = [1, 1]} : vector<4x256xf32> to vector<1x256xf32>
    %61 = vector.broadcast %8 : vector<4x1xf32> to vector<4x256xf32>
    %62 = vector.broadcast %60 : vector<1x256xf32> to vector<4x256xf32>
    %63 = arith.mulf %61, %62 : vector<4x256xf32>
    %64 = arith.addf %5, %63 : vector<4x256xf32>
    %65 = vector.extract_strided_slice %59 {offsets = [1, 0], sizes = [1, 256], strides = [1, 1]} : vector<4x256xf32> to vector<1x256xf32>
    %66 = vector.broadcast %9 : vector<4x1xf32> to vector<4x256xf32>
    %67 = vector.broadcast %65 : vector<1x256xf32> to vector<4x256xf32>
    %68 = arith.mulf %66, %67 : vector<4x256xf32>
    %69 = arith.addf %64, %68 : vector<4x256xf32>
    %70 = vector.extract_strided_slice %59 {offsets = [2, 0], sizes = [1, 256], strides = [1, 1]} : vector<4x256xf32> to vector<1x256xf32>
    %71 = vector.broadcast %10 : vector<4x1xf32> to vector<4x256xf32>
    %72 = vector.broadcast %70 : vector<1x256xf32> to vector<4x256xf32>
    %73 = arith.mulf %71, %72 : vector<4x256xf32>
    %74 = arith.addf %69, %73 : vector<4x256xf32>
    %75 = vector.extract_strided_slice %59 {offsets = [3, 0], sizes = [1, 256], strides = [1, 1]} : vector<4x256xf32> to vector<1x256xf32>
    %76 = vector.broadcast %11 : vector<4x1xf32> to vector<4x256xf32>
    %77 = vector.broadcast %75 : vector<1x256xf32> to vector<4x256xf32>
    %78 = arith.mulf %76, %77 : vector<4x256xf32>
    %79 = arith.addf %74, %78 : vector<4x256xf32>
    %cst_14 = arith.constant 0.000000e+00 : f32
    %80 = vector.broadcast %cst_14 : f32 to vector<4x256xf32>
    %81 = arith.subf %80, %79 : vector<4x256xf32>
    %82 = math.exp %81 : vector<4x256xf32>
    %cst_15 = arith.constant 1.000000e+00 : f32
    %83 = vector.broadcast %cst_15 : f32 to vector<4x256xf32>
    %84 = arith.addf %83, %82 : vector<4x256xf32>
    %cst_16 = arith.constant 1.000000e+00 : f32
    %85 = vector.broadcast %cst_16 : f32 to vector<4x256xf32>
    %86 = arith.divf %85, %84 : vector<4x256xf32>
    %87 = arith.mulf %79, %86 : vector<4x256xf32>
    %88 = tpu.concatenate %57, %87 in 0 : vector<4x256xf32>, vector<4x256xf32> -> vector<8x256xf32>
    %89 = tpu.iota {dimensions = array<i32: 1>} : vector<8x256xi32>
    %c15_i32 = arith.constant 15 : i32
    %90 = vector.broadcast %c15_i32 : i32 to vector<8x256xi32>
    %91 = arith.andi %89, %90 : vector<8x256xi32>
    %c4_i32 = arith.constant 4 : i32
    %92 = vector.broadcast %c4_i32 : i32 to vector<8x256xi32>
    %93 = arith.shrsi %89, %92 : vector<8x256xi32>
    %c-2_i32 = arith.constant -2 : i32
    %94 = vector.broadcast %c-2_i32 : i32 to vector<8x256xi32>
    %95 = arith.addi %91, %94 : vector<8x256xi32>
    %c0_i32 = arith.constant 0 : i32
    %96 = vector.broadcast %c0_i32 : i32 to vector<8x256xi32>
    %97 = arith.cmpi sge, %95, %96 : vector<8x256xi32>
    %c-2_i32_17 = arith.constant -2 : i32
    %98 = vector.broadcast %c-2_i32_17 : i32 to vector<8x256xi32>
    %99 = arith.addi %91, %98 : vector<8x256xi32>
    %c16_i32 = arith.constant 16 : i32
    %100 = vector.broadcast %c16_i32 : i32 to vector<8x256xi32>
    %101 = arith.cmpi slt, %99, %100 : vector<8x256xi32>
    %102 = arith.andi %97, %101 : vector<8x256xi1>
    %c-1_i32 = arith.constant -1 : i32
    %103 = vector.broadcast %c-1_i32 : i32 to vector<8x256xi32>
    %104 = arith.addi %91, %103 : vector<8x256xi32>
    %c0_i32_18 = arith.constant 0 : i32
    %105 = vector.broadcast %c0_i32_18 : i32 to vector<8x256xi32>
    %106 = arith.cmpi sge, %104, %105 : vector<8x256xi32>
    %c-1_i32_19 = arith.constant -1 : i32
    %107 = vector.broadcast %c-1_i32_19 : i32 to vector<8x256xi32>
    %108 = arith.addi %91, %107 : vector<8x256xi32>
    %c16_i32_20 = arith.constant 16 : i32
    %109 = vector.broadcast %c16_i32_20 : i32 to vector<8x256xi32>
    %110 = arith.cmpi slt, %108, %109 : vector<8x256xi32>
    %111 = arith.andi %106, %110 : vector<8x256xi1>
    %c1_i32 = arith.constant 1 : i32
    %112 = vector.broadcast %c1_i32 : i32 to vector<8x256xi32>
    %113 = arith.addi %91, %112 : vector<8x256xi32>
    %c0_i32_21 = arith.constant 0 : i32
    %114 = vector.broadcast %c0_i32_21 : i32 to vector<8x256xi32>
    %115 = arith.cmpi sge, %113, %114 : vector<8x256xi32>
    %c1_i32_22 = arith.constant 1 : i32
    %116 = vector.broadcast %c1_i32_22 : i32 to vector<8x256xi32>
    %117 = arith.addi %91, %116 : vector<8x256xi32>
    %c16_i32_23 = arith.constant 16 : i32
    %118 = vector.broadcast %c16_i32_23 : i32 to vector<8x256xi32>
    %119 = arith.cmpi slt, %117, %118 : vector<8x256xi32>
    %120 = arith.andi %115, %119 : vector<8x256xi1>
    %c2_i32 = arith.constant 2 : i32
    %121 = vector.broadcast %c2_i32 : i32 to vector<8x256xi32>
    %122 = arith.addi %91, %121 : vector<8x256xi32>
    %c0_i32_24 = arith.constant 0 : i32
    %123 = vector.broadcast %c0_i32_24 : i32 to vector<8x256xi32>
    %124 = arith.cmpi sge, %122, %123 : vector<8x256xi32>
    %c2_i32_25 = arith.constant 2 : i32
    %125 = vector.broadcast %c2_i32_25 : i32 to vector<8x256xi32>
    %126 = arith.addi %91, %125 : vector<8x256xi32>
    %c16_i32_26 = arith.constant 16 : i32
    %127 = vector.broadcast %c16_i32_26 : i32 to vector<8x256xi32>
    %128 = arith.cmpi slt, %126, %127 : vector<8x256xi32>
    %129 = arith.andi %124, %128 : vector<8x256xi1>
    %c-2_i32_27 = arith.constant -2 : i32
    %130 = vector.broadcast %c-2_i32_27 : i32 to vector<8x256xi32>
    %131 = arith.addi %93, %130 : vector<8x256xi32>
    %c0_i32_28 = arith.constant 0 : i32
    %132 = vector.broadcast %c0_i32_28 : i32 to vector<8x256xi32>
    %133 = arith.cmpi sge, %131, %132 : vector<8x256xi32>
    %c-2_i32_29 = arith.constant -2 : i32
    %134 = vector.broadcast %c-2_i32_29 : i32 to vector<8x256xi32>
    %135 = arith.addi %93, %134 : vector<8x256xi32>
    %c16_i32_30 = arith.constant 16 : i32
    %136 = vector.broadcast %c16_i32_30 : i32 to vector<8x256xi32>
    %137 = arith.cmpi slt, %135, %136 : vector<8x256xi32>
    %138 = arith.andi %133, %137 : vector<8x256xi1>
    %c-1_i32_31 = arith.constant -1 : i32
    %139 = vector.broadcast %c-1_i32_31 : i32 to vector<8x256xi32>
    %140 = arith.addi %93, %139 : vector<8x256xi32>
    %c0_i32_32 = arith.constant 0 : i32
    %141 = vector.broadcast %c0_i32_32 : i32 to vector<8x256xi32>
    %142 = arith.cmpi sge, %140, %141 : vector<8x256xi32>
    %c-1_i32_33 = arith.constant -1 : i32
    %143 = vector.broadcast %c-1_i32_33 : i32 to vector<8x256xi32>
    %144 = arith.addi %93, %143 : vector<8x256xi32>
    %c16_i32_34 = arith.constant 16 : i32
    %145 = vector.broadcast %c16_i32_34 : i32 to vector<8x256xi32>
    %146 = arith.cmpi slt, %144, %145 : vector<8x256xi32>
    %147 = arith.andi %142, %146 : vector<8x256xi1>
    %c1_i32_35 = arith.constant 1 : i32
    %148 = vector.broadcast %c1_i32_35 : i32 to vector<8x256xi32>
    %149 = arith.addi %93, %148 : vector<8x256xi32>
    %c0_i32_36 = arith.constant 0 : i32
    %150 = vector.broadcast %c0_i32_36 : i32 to vector<8x256xi32>
    %151 = arith.cmpi sge, %149, %150 : vector<8x256xi32>
    %c1_i32_37 = arith.constant 1 : i32
    %152 = vector.broadcast %c1_i32_37 : i32 to vector<8x256xi32>
    %153 = arith.addi %93, %152 : vector<8x256xi32>
    %c16_i32_38 = arith.constant 16 : i32
    %154 = vector.broadcast %c16_i32_38 : i32 to vector<8x256xi32>
    %155 = arith.cmpi slt, %153, %154 : vector<8x256xi32>
    %156 = arith.andi %151, %155 : vector<8x256xi1>
    %c2_i32_39 = arith.constant 2 : i32
    %157 = vector.broadcast %c2_i32_39 : i32 to vector<8x256xi32>
    %158 = arith.addi %93, %157 : vector<8x256xi32>
    %c0_i32_40 = arith.constant 0 : i32
    %159 = vector.broadcast %c0_i32_40 : i32 to vector<8x256xi32>
    %160 = arith.cmpi sge, %158, %159 : vector<8x256xi32>
    %c2_i32_41 = arith.constant 2 : i32
    %161 = vector.broadcast %c2_i32_41 : i32 to vector<8x256xi32>
    %162 = arith.addi %93, %161 : vector<8x256xi32>
    %c16_i32_42 = arith.constant 16 : i32
    %163 = vector.broadcast %c16_i32_42 : i32 to vector<8x256xi32>
    %164 = arith.cmpi slt, %162, %163 : vector<8x256xi32>
    %165 = arith.andi %160, %164 : vector<8x256xi1>
    %c2_i32_43 = arith.constant 2 : i32
    %166 = tpu.dynamic_rotate %88 by %c2_i32_43 dim 1 : vector<8x256xf32>, i32 -> vector<8x256xf32>
    %cst_44 = arith.constant 0xFF800000 : f32
    %167 = vector.broadcast %cst_44 : f32 to vector<8x256xf32>
    %168 = arith.select %102, %166, %167 : vector<8x256xi1>, vector<8x256xf32>
    %169 = arith.maximumf %88, %168 : vector<8x256xf32>
    %c1_i32_45 = arith.constant 1 : i32
    %170 = tpu.dynamic_rotate %88 by %c1_i32_45 dim 1 : vector<8x256xf32>, i32 -> vector<8x256xf32>
    %cst_46 = arith.constant 0xFF800000 : f32
    %171 = vector.broadcast %cst_46 : f32 to vector<8x256xf32>
    %172 = arith.select %111, %170, %171 : vector<8x256xi1>, vector<8x256xf32>
    %173 = arith.maximumf %169, %172 : vector<8x256xf32>
    %c255_i32 = arith.constant 255 : i32
    %174 = tpu.dynamic_rotate %88 by %c255_i32 dim 1 : vector<8x256xf32>, i32 -> vector<8x256xf32>
    %cst_47 = arith.constant 0xFF800000 : f32
    %175 = vector.broadcast %cst_47 : f32 to vector<8x256xf32>
    %176 = arith.select %120, %174, %175 : vector<8x256xi1>, vector<8x256xf32>
    %177 = arith.maximumf %173, %176 : vector<8x256xf32>
    %c254_i32 = arith.constant 254 : i32
    %178 = tpu.dynamic_rotate %88 by %c254_i32 dim 1 : vector<8x256xf32>, i32 -> vector<8x256xf32>
    %cst_48 = arith.constant 0xFF800000 : f32
    %179 = vector.broadcast %cst_48 : f32 to vector<8x256xf32>
    %180 = arith.select %129, %178, %179 : vector<8x256xi1>, vector<8x256xf32>
    %181 = arith.maximumf %177, %180 : vector<8x256xf32>
    %c32_i32 = arith.constant 32 : i32
    %182 = tpu.dynamic_rotate %181 by %c32_i32 dim 1 : vector<8x256xf32>, i32 -> vector<8x256xf32>
    %cst_49 = arith.constant 0xFF800000 : f32
    %183 = vector.broadcast %cst_49 : f32 to vector<8x256xf32>
    %184 = arith.select %138, %182, %183 : vector<8x256xi1>, vector<8x256xf32>
    %185 = arith.maximumf %181, %184 : vector<8x256xf32>
    %c16_i32_50 = arith.constant 16 : i32
    %186 = tpu.dynamic_rotate %181 by %c16_i32_50 dim 1 : vector<8x256xf32>, i32 -> vector<8x256xf32>
    %cst_51 = arith.constant 0xFF800000 : f32
    %187 = vector.broadcast %cst_51 : f32 to vector<8x256xf32>
    %188 = arith.select %147, %186, %187 : vector<8x256xi1>, vector<8x256xf32>
    %189 = arith.maximumf %185, %188 : vector<8x256xf32>
    %c240_i32 = arith.constant 240 : i32
    %190 = tpu.dynamic_rotate %181 by %c240_i32 dim 1 : vector<8x256xf32>, i32 -> vector<8x256xf32>
    %cst_52 = arith.constant 0xFF800000 : f32
    %191 = vector.broadcast %cst_52 : f32 to vector<8x256xf32>
    %192 = arith.select %156, %190, %191 : vector<8x256xi1>, vector<8x256xf32>
    %193 = arith.maximumf %189, %192 : vector<8x256xf32>
    %c224_i32 = arith.constant 224 : i32
    %194 = tpu.dynamic_rotate %181 by %c224_i32 dim 1 : vector<8x256xf32>, i32 -> vector<8x256xf32>
    %cst_53 = arith.constant 0xFF800000 : f32
    %195 = vector.broadcast %cst_53 : f32 to vector<8x256xf32>
    %196 = arith.select %165, %194, %195 : vector<8x256xi1>, vector<8x256xf32>
    %197 = arith.maximumf %193, %196 : vector<8x256xf32>
    %c2_i32_54 = arith.constant 2 : i32
    %198 = tpu.dynamic_rotate %197 by %c2_i32_54 dim 1 : vector<8x256xf32>, i32 -> vector<8x256xf32>
    %cst_55 = arith.constant 0xFF800000 : f32
    %199 = vector.broadcast %cst_55 : f32 to vector<8x256xf32>
    %200 = arith.select %102, %198, %199 : vector<8x256xi1>, vector<8x256xf32>
    %201 = arith.maximumf %197, %200 : vector<8x256xf32>
    %c1_i32_56 = arith.constant 1 : i32
    %202 = tpu.dynamic_rotate %197 by %c1_i32_56 dim 1 : vector<8x256xf32>, i32 -> vector<8x256xf32>
    %cst_57 = arith.constant 0xFF800000 : f32
    %203 = vector.broadcast %cst_57 : f32 to vector<8x256xf32>
    %204 = arith.select %111, %202, %203 : vector<8x256xi1>, vector<8x256xf32>
    %205 = arith.maximumf %201, %204 : vector<8x256xf32>
    %c255_i32_58 = arith.constant 255 : i32
    %206 = tpu.dynamic_rotate %197 by %c255_i32_58 dim 1 : vector<8x256xf32>, i32 -> vector<8x256xf32>
    %cst_59 = arith.constant 0xFF800000 : f32
    %207 = vector.broadcast %cst_59 : f32 to vector<8x256xf32>
    %208 = arith.select %120, %206, %207 : vector<8x256xi1>, vector<8x256xf32>
    %209 = arith.maximumf %205, %208 : vector<8x256xf32>
    %c254_i32_60 = arith.constant 254 : i32
    %210 = tpu.dynamic_rotate %197 by %c254_i32_60 dim 1 : vector<8x256xf32>, i32 -> vector<8x256xf32>
    %cst_61 = arith.constant 0xFF800000 : f32
    %211 = vector.broadcast %cst_61 : f32 to vector<8x256xf32>
    %212 = arith.select %129, %210, %211 : vector<8x256xi1>, vector<8x256xf32>
    %213 = arith.maximumf %209, %212 : vector<8x256xf32>
    %c32_i32_62 = arith.constant 32 : i32
    %214 = tpu.dynamic_rotate %213 by %c32_i32_62 dim 1 : vector<8x256xf32>, i32 -> vector<8x256xf32>
    %cst_63 = arith.constant 0xFF800000 : f32
    %215 = vector.broadcast %cst_63 : f32 to vector<8x256xf32>
    %216 = arith.select %138, %214, %215 : vector<8x256xi1>, vector<8x256xf32>
    %217 = arith.maximumf %213, %216 : vector<8x256xf32>
    %c16_i32_64 = arith.constant 16 : i32
    %218 = tpu.dynamic_rotate %213 by %c16_i32_64 dim 1 : vector<8x256xf32>, i32 -> vector<8x256xf32>
    %cst_65 = arith.constant 0xFF800000 : f32
    %219 = vector.broadcast %cst_65 : f32 to vector<8x256xf32>
    %220 = arith.select %147, %218, %219 : vector<8x256xi1>, vector<8x256xf32>
    %221 = arith.maximumf %217, %220 : vector<8x256xf32>
    %c240_i32_66 = arith.constant 240 : i32
    %222 = tpu.dynamic_rotate %213 by %c240_i32_66 dim 1 : vector<8x256xf32>, i32 -> vector<8x256xf32>
    %cst_67 = arith.constant 0xFF800000 : f32
    %223 = vector.broadcast %cst_67 : f32 to vector<8x256xf32>
    %224 = arith.select %156, %222, %223 : vector<8x256xi1>, vector<8x256xf32>
    %225 = arith.maximumf %221, %224 : vector<8x256xf32>
    %c224_i32_68 = arith.constant 224 : i32
    %226 = tpu.dynamic_rotate %213 by %c224_i32_68 dim 1 : vector<8x256xf32>, i32 -> vector<8x256xf32>
    %cst_69 = arith.constant 0xFF800000 : f32
    %227 = vector.broadcast %cst_69 : f32 to vector<8x256xf32>
    %228 = arith.select %165, %226, %227 : vector<8x256xi1>, vector<8x256xf32>
    %229 = arith.maximumf %225, %228 : vector<8x256xf32>
    %c2_i32_70 = arith.constant 2 : i32
    %230 = tpu.dynamic_rotate %229 by %c2_i32_70 dim 1 : vector<8x256xf32>, i32 -> vector<8x256xf32>
    %cst_71 = arith.constant 0xFF800000 : f32
    %231 = vector.broadcast %cst_71 : f32 to vector<8x256xf32>
    %232 = arith.select %102, %230, %231 : vector<8x256xi1>, vector<8x256xf32>
    %233 = arith.maximumf %229, %232 : vector<8x256xf32>
    %c1_i32_72 = arith.constant 1 : i32
    %234 = tpu.dynamic_rotate %229 by %c1_i32_72 dim 1 : vector<8x256xf32>, i32 -> vector<8x256xf32>
    %cst_73 = arith.constant 0xFF800000 : f32
    %235 = vector.broadcast %cst_73 : f32 to vector<8x256xf32>
    %236 = arith.select %111, %234, %235 : vector<8x256xi1>, vector<8x256xf32>
    %237 = arith.maximumf %233, %236 : vector<8x256xf32>
    %c255_i32_74 = arith.constant 255 : i32
    %238 = tpu.dynamic_rotate %229 by %c255_i32_74 dim 1 : vector<8x256xf32>, i32 -> vector<8x256xf32>
    %cst_75 = arith.constant 0xFF800000 : f32
    %239 = vector.broadcast %cst_75 : f32 to vector<8x256xf32>
    %240 = arith.select %120, %238, %239 : vector<8x256xi1>, vector<8x256xf32>
    %241 = arith.maximumf %237, %240 : vector<8x256xf32>
    %c254_i32_76 = arith.constant 254 : i32
    %242 = tpu.dynamic_rotate %229 by %c254_i32_76 dim 1 : vector<8x256xf32>, i32 -> vector<8x256xf32>
    %cst_77 = arith.constant 0xFF800000 : f32
    %243 = vector.broadcast %cst_77 : f32 to vector<8x256xf32>
    %244 = arith.select %129, %242, %243 : vector<8x256xi1>, vector<8x256xf32>
    %245 = arith.maximumf %241, %244 : vector<8x256xf32>
    %c32_i32_78 = arith.constant 32 : i32
    %246 = tpu.dynamic_rotate %245 by %c32_i32_78 dim 1 : vector<8x256xf32>, i32 -> vector<8x256xf32>
    %cst_79 = arith.constant 0xFF800000 : f32
    %247 = vector.broadcast %cst_79 : f32 to vector<8x256xf32>
    %248 = arith.select %138, %246, %247 : vector<8x256xi1>, vector<8x256xf32>
    %249 = arith.maximumf %245, %248 : vector<8x256xf32>
    %c16_i32_80 = arith.constant 16 : i32
    %250 = tpu.dynamic_rotate %245 by %c16_i32_80 dim 1 : vector<8x256xf32>, i32 -> vector<8x256xf32>
    %cst_81 = arith.constant 0xFF800000 : f32
    %251 = vector.broadcast %cst_81 : f32 to vector<8x256xf32>
    %252 = arith.select %147, %250, %251 : vector<8x256xi1>, vector<8x256xf32>
    %253 = arith.maximumf %249, %252 : vector<8x256xf32>
    %c240_i32_82 = arith.constant 240 : i32
    %254 = tpu.dynamic_rotate %245 by %c240_i32_82 dim 1 : vector<8x256xf32>, i32 -> vector<8x256xf32>
    %cst_83 = arith.constant 0xFF800000 : f32
    %255 = vector.broadcast %cst_83 : f32 to vector<8x256xf32>
    %256 = arith.select %156, %254, %255 : vector<8x256xi1>, vector<8x256xf32>
    %257 = arith.maximumf %253, %256 : vector<8x256xf32>
    %c224_i32_84 = arith.constant 224 : i32
    %258 = tpu.dynamic_rotate %245 by %c224_i32_84 dim 1 : vector<8x256xf32>, i32 -> vector<8x256xf32>
    %cst_85 = arith.constant 0xFF800000 : f32
    %259 = vector.broadcast %cst_85 : f32 to vector<8x256xf32>
    %260 = arith.select %165, %258, %259 : vector<8x256xi1>, vector<8x256xf32>
    %261 = arith.maximumf %257, %260 : vector<8x256xf32>
    %262 = vector.extract_strided_slice %88 {offsets = [0, 0], sizes = [1, 256], strides = [1, 1]} : vector<8x256xf32> to vector<1x256xf32>
    %263 = vector.broadcast %12 : vector<8x1xf32> to vector<8x256xf32>
    %264 = vector.broadcast %262 : vector<1x256xf32> to vector<8x256xf32>
    %265 = arith.mulf %263, %264 : vector<8x256xf32>
    %266 = arith.addf %7, %265 : vector<8x256xf32>
    %267 = vector.extract_strided_slice %88 {offsets = [1, 0], sizes = [1, 256], strides = [1, 1]} : vector<8x256xf32> to vector<1x256xf32>
    %268 = vector.broadcast %13 : vector<8x1xf32> to vector<8x256xf32>
    %269 = vector.broadcast %267 : vector<1x256xf32> to vector<8x256xf32>
    %270 = arith.mulf %268, %269 : vector<8x256xf32>
    %271 = arith.addf %266, %270 : vector<8x256xf32>
    %272 = vector.extract_strided_slice %88 {offsets = [2, 0], sizes = [1, 256], strides = [1, 1]} : vector<8x256xf32> to vector<1x256xf32>
    %273 = vector.broadcast %14 : vector<8x1xf32> to vector<8x256xf32>
    %274 = vector.broadcast %272 : vector<1x256xf32> to vector<8x256xf32>
    %275 = arith.mulf %273, %274 : vector<8x256xf32>
    %276 = arith.addf %271, %275 : vector<8x256xf32>
    %277 = vector.extract_strided_slice %88 {offsets = [3, 0], sizes = [1, 256], strides = [1, 1]} : vector<8x256xf32> to vector<1x256xf32>
    %278 = vector.broadcast %15 : vector<8x1xf32> to vector<8x256xf32>
    %279 = vector.broadcast %277 : vector<1x256xf32> to vector<8x256xf32>
    %280 = arith.mulf %278, %279 : vector<8x256xf32>
    %281 = arith.addf %276, %280 : vector<8x256xf32>
    %282 = vector.extract_strided_slice %197 {offsets = [0, 0], sizes = [1, 256], strides = [1, 1]} : vector<8x256xf32> to vector<1x256xf32>
    %283 = vector.broadcast %16 : vector<8x1xf32> to vector<8x256xf32>
    %284 = vector.broadcast %282 : vector<1x256xf32> to vector<8x256xf32>
    %285 = arith.mulf %283, %284 : vector<8x256xf32>
    %286 = arith.addf %281, %285 : vector<8x256xf32>
    %287 = vector.extract_strided_slice %197 {offsets = [1, 0], sizes = [1, 256], strides = [1, 1]} : vector<8x256xf32> to vector<1x256xf32>
    %288 = vector.broadcast %17 : vector<8x1xf32> to vector<8x256xf32>
    %289 = vector.broadcast %287 : vector<1x256xf32> to vector<8x256xf32>
    %290 = arith.mulf %288, %289 : vector<8x256xf32>
    %291 = arith.addf %286, %290 : vector<8x256xf32>
    %292 = vector.extract_strided_slice %197 {offsets = [2, 0], sizes = [1, 256], strides = [1, 1]} : vector<8x256xf32> to vector<1x256xf32>
    %293 = vector.broadcast %18 : vector<8x1xf32> to vector<8x256xf32>
    %294 = vector.broadcast %292 : vector<1x256xf32> to vector<8x256xf32>
    %295 = arith.mulf %293, %294 : vector<8x256xf32>
    %296 = arith.addf %291, %295 : vector<8x256xf32>
    %297 = vector.extract_strided_slice %197 {offsets = [3, 0], sizes = [1, 256], strides = [1, 1]} : vector<8x256xf32> to vector<1x256xf32>
    %298 = vector.broadcast %19 : vector<8x1xf32> to vector<8x256xf32>
    %299 = vector.broadcast %297 : vector<1x256xf32> to vector<8x256xf32>
    %300 = arith.mulf %298, %299 : vector<8x256xf32>
    %301 = arith.addf %296, %300 : vector<8x256xf32>
    %302 = vector.extract_strided_slice %229 {offsets = [0, 0], sizes = [1, 256], strides = [1, 1]} : vector<8x256xf32> to vector<1x256xf32>
    %303 = vector.broadcast %20 : vector<8x1xf32> to vector<8x256xf32>
    %304 = vector.broadcast %302 : vector<1x256xf32> to vector<8x256xf32>
    %305 = arith.mulf %303, %304 : vector<8x256xf32>
    %306 = arith.addf %301, %305 : vector<8x256xf32>
    %307 = vector.extract_strided_slice %229 {offsets = [1, 0], sizes = [1, 256], strides = [1, 1]} : vector<8x256xf32> to vector<1x256xf32>
    %308 = vector.broadcast %21 : vector<8x1xf32> to vector<8x256xf32>
    %309 = vector.broadcast %307 : vector<1x256xf32> to vector<8x256xf32>
    %310 = arith.mulf %308, %309 : vector<8x256xf32>
    %311 = arith.addf %306, %310 : vector<8x256xf32>
    %312 = vector.extract_strided_slice %229 {offsets = [2, 0], sizes = [1, 256], strides = [1, 1]} : vector<8x256xf32> to vector<1x256xf32>
    %313 = vector.broadcast %22 : vector<8x1xf32> to vector<8x256xf32>
    %314 = vector.broadcast %312 : vector<1x256xf32> to vector<8x256xf32>
    %315 = arith.mulf %313, %314 : vector<8x256xf32>
    %316 = arith.addf %311, %315 : vector<8x256xf32>
    %317 = vector.extract_strided_slice %229 {offsets = [3, 0], sizes = [1, 256], strides = [1, 1]} : vector<8x256xf32> to vector<1x256xf32>
    %318 = vector.broadcast %23 : vector<8x1xf32> to vector<8x256xf32>
    %319 = vector.broadcast %317 : vector<1x256xf32> to vector<8x256xf32>
    %320 = arith.mulf %318, %319 : vector<8x256xf32>
    %321 = arith.addf %316, %320 : vector<8x256xf32>
    %322 = vector.extract_strided_slice %261 {offsets = [0, 0], sizes = [1, 256], strides = [1, 1]} : vector<8x256xf32> to vector<1x256xf32>
    %323 = vector.broadcast %24 : vector<8x1xf32> to vector<8x256xf32>
    %324 = vector.broadcast %322 : vector<1x256xf32> to vector<8x256xf32>
    %325 = arith.mulf %323, %324 : vector<8x256xf32>
    %326 = arith.addf %321, %325 : vector<8x256xf32>
    %327 = vector.extract_strided_slice %261 {offsets = [1, 0], sizes = [1, 256], strides = [1, 1]} : vector<8x256xf32> to vector<1x256xf32>
    %328 = vector.broadcast %25 : vector<8x1xf32> to vector<8x256xf32>
    %329 = vector.broadcast %327 : vector<1x256xf32> to vector<8x256xf32>
    %330 = arith.mulf %328, %329 : vector<8x256xf32>
    %331 = arith.addf %326, %330 : vector<8x256xf32>
    %332 = vector.extract_strided_slice %261 {offsets = [2, 0], sizes = [1, 256], strides = [1, 1]} : vector<8x256xf32> to vector<1x256xf32>
    %333 = vector.broadcast %26 : vector<8x1xf32> to vector<8x256xf32>
    %334 = vector.broadcast %332 : vector<1x256xf32> to vector<8x256xf32>
    %335 = arith.mulf %333, %334 : vector<8x256xf32>
    %336 = arith.addf %331, %335 : vector<8x256xf32>
    %337 = vector.extract_strided_slice %261 {offsets = [3, 0], sizes = [1, 256], strides = [1, 1]} : vector<8x256xf32> to vector<1x256xf32>
    %338 = vector.broadcast %27 : vector<8x1xf32> to vector<8x256xf32>
    %339 = vector.broadcast %337 : vector<1x256xf32> to vector<8x256xf32>
    %340 = arith.mulf %338, %339 : vector<8x256xf32>
    %341 = arith.addf %336, %340 : vector<8x256xf32>
    %cst_86 = arith.constant 0.000000e+00 : f32
    %342 = vector.broadcast %cst_86 : f32 to vector<8x256xf32>
    %343 = arith.subf %342, %341 : vector<8x256xf32>
    %344 = math.exp %343 : vector<8x256xf32>
    %cst_87 = arith.constant 1.000000e+00 : f32
    %345 = vector.broadcast %cst_87 : f32 to vector<8x256xf32>
    %346 = arith.addf %345, %344 : vector<8x256xf32>
    %cst_88 = arith.constant 1.000000e+00 : f32
    %347 = vector.broadcast %cst_88 : f32 to vector<8x256xf32>
    %348 = arith.divf %347, %346 : vector<8x256xf32>
    %349 = arith.mulf %341, %348 : vector<8x256xf32>
    %c0_89 = arith.constant 0 : index
    %c0_90 = arith.constant 0 : index
    %c0_91 = arith.constant 0 : index
    %350 = vector.load %arg5[%c0_89, %c0_90, %c0_91] : memref<2x8x256xf32, #tpu.memory_space<vmem>>, vector<1x8x256xf32>
    %351 = vector.shape_cast %350 : vector<1x8x256xf32> to vector<8x256xf32>
    %352 = vector.shape_cast %349 : vector<8x256xf32> to vector<1x8x256xf32>
    tpu.vector_store %arg5[%c0_89, %c0_90, %c0_91], %352 {strides = array<i32>} : memref<2x8x256xf32, #tpu.memory_space<vmem>>, vector<1x8x256xf32>,
    %353 = vector.extract_strided_slice %88 {offsets = [4, 0], sizes = [1, 256], strides = [1, 1]} : vector<8x256xf32> to vector<1x256xf32>
    %354 = vector.broadcast %12 : vector<8x1xf32> to vector<8x256xf32>
    %355 = vector.broadcast %353 : vector<1x256xf32> to vector<8x256xf32>
    %356 = arith.mulf %354, %355 : vector<8x256xf32>
    %357 = arith.addf %7, %356 : vector<8x256xf32>
    %358 = vector.extract_strided_slice %88 {offsets = [5, 0], sizes = [1, 256], strides = [1, 1]} : vector<8x256xf32> to vector<1x256xf32>
    %359 = vector.broadcast %13 : vector<8x1xf32> to vector<8x256xf32>
    %360 = vector.broadcast %358 : vector<1x256xf32> to vector<8x256xf32>
    %361 = arith.mulf %359, %360 : vector<8x256xf32>
    %362 = arith.addf %357, %361 : vector<8x256xf32>
    %363 = vector.extract_strided_slice %88 {offsets = [6, 0], sizes = [1, 256], strides = [1, 1]} : vector<8x256xf32> to vector<1x256xf32>
    %364 = vector.broadcast %14 : vector<8x1xf32> to vector<8x256xf32>
    %365 = vector.broadcast %363 : vector<1x256xf32> to vector<8x256xf32>
    %366 = arith.mulf %364, %365 : vector<8x256xf32>
    %367 = arith.addf %362, %366 : vector<8x256xf32>
    %368 = vector.extract_strided_slice %88 {offsets = [7, 0], sizes = [1, 256], strides = [1, 1]} : vector<8x256xf32> to vector<1x256xf32>
    %369 = vector.broadcast %15 : vector<8x1xf32> to vector<8x256xf32>
    %370 = vector.broadcast %368 : vector<1x256xf32> to vector<8x256xf32>
    %371 = arith.mulf %369, %370 : vector<8x256xf32>
    %372 = arith.addf %367, %371 : vector<8x256xf32>
    %373 = vector.extract_strided_slice %197 {offsets = [4, 0], sizes = [1, 256], strides = [1, 1]} : vector<8x256xf32> to vector<1x256xf32>
    %374 = vector.broadcast %16 : vector<8x1xf32> to vector<8x256xf32>
    %375 = vector.broadcast %373 : vector<1x256xf32> to vector<8x256xf32>
    %376 = arith.mulf %374, %375 : vector<8x256xf32>
    %377 = arith.addf %372, %376 : vector<8x256xf32>
    %378 = vector.extract_strided_slice %197 {offsets = [5, 0], sizes = [1, 256], strides = [1, 1]} : vector<8x256xf32> to vector<1x256xf32>
    %379 = vector.broadcast %17 : vector<8x1xf32> to vector<8x256xf32>
    %380 = vector.broadcast %378 : vector<1x256xf32> to vector<8x256xf32>
    %381 = arith.mulf %379, %380 : vector<8x256xf32>
    %382 = arith.addf %377, %381 : vector<8x256xf32>
    %383 = vector.extract_strided_slice %197 {offsets = [6, 0], sizes = [1, 256], strides = [1, 1]} : vector<8x256xf32> to vector<1x256xf32>
    %384 = vector.broadcast %18 : vector<8x1xf32> to vector<8x256xf32>
    %385 = vector.broadcast %383 : vector<1x256xf32> to vector<8x256xf32>
    %386 = arith.mulf %384, %385 : vector<8x256xf32>
    %387 = arith.addf %382, %386 : vector<8x256xf32>
    %388 = vector.extract_strided_slice %197 {offsets = [7, 0], sizes = [1, 256], strides = [1, 1]} : vector<8x256xf32> to vector<1x256xf32>
    %389 = vector.broadcast %19 : vector<8x1xf32> to vector<8x256xf32>
    %390 = vector.broadcast %388 : vector<1x256xf32> to vector<8x256xf32>
    %391 = arith.mulf %389, %390 : vector<8x256xf32>
    %392 = arith.addf %387, %391 : vector<8x256xf32>
    %393 = vector.extract_strided_slice %229 {offsets = [4, 0], sizes = [1, 256], strides = [1, 1]} : vector<8x256xf32> to vector<1x256xf32>
    %394 = vector.broadcast %20 : vector<8x1xf32> to vector<8x256xf32>
    %395 = vector.broadcast %393 : vector<1x256xf32> to vector<8x256xf32>
    %396 = arith.mulf %394, %395 : vector<8x256xf32>
    %397 = arith.addf %392, %396 : vector<8x256xf32>
    %398 = vector.extract_strided_slice %229 {offsets = [5, 0], sizes = [1, 256], strides = [1, 1]} : vector<8x256xf32> to vector<1x256xf32>
    %399 = vector.broadcast %21 : vector<8x1xf32> to vector<8x256xf32>
    %400 = vector.broadcast %398 : vector<1x256xf32> to vector<8x256xf32>
    %401 = arith.mulf %399, %400 : vector<8x256xf32>
    %402 = arith.addf %397, %401 : vector<8x256xf32>
    %403 = vector.extract_strided_slice %229 {offsets = [6, 0], sizes = [1, 256], strides = [1, 1]} : vector<8x256xf32> to vector<1x256xf32>
    %404 = vector.broadcast %22 : vector<8x1xf32> to vector<8x256xf32>
    %405 = vector.broadcast %403 : vector<1x256xf32> to vector<8x256xf32>
    %406 = arith.mulf %404, %405 : vector<8x256xf32>
    %407 = arith.addf %402, %406 : vector<8x256xf32>
    %408 = vector.extract_strided_slice %229 {offsets = [7, 0], sizes = [1, 256], strides = [1, 1]} : vector<8x256xf32> to vector<1x256xf32>
    %409 = vector.broadcast %23 : vector<8x1xf32> to vector<8x256xf32>
    %410 = vector.broadcast %408 : vector<1x256xf32> to vector<8x256xf32>
    %411 = arith.mulf %409, %410 : vector<8x256xf32>
    %412 = arith.addf %407, %411 : vector<8x256xf32>
    %413 = vector.extract_strided_slice %261 {offsets = [4, 0], sizes = [1, 256], strides = [1, 1]} : vector<8x256xf32> to vector<1x256xf32>
    %414 = vector.broadcast %24 : vector<8x1xf32> to vector<8x256xf32>
    %415 = vector.broadcast %413 : vector<1x256xf32> to vector<8x256xf32>
    %416 = arith.mulf %414, %415 : vector<8x256xf32>
    %417 = arith.addf %412, %416 : vector<8x256xf32>
    %418 = vector.extract_strided_slice %261 {offsets = [5, 0], sizes = [1, 256], strides = [1, 1]} : vector<8x256xf32> to vector<1x256xf32>
    %419 = vector.broadcast %25 : vector<8x1xf32> to vector<8x256xf32>
    %420 = vector.broadcast %418 : vector<1x256xf32> to vector<8x256xf32>
    %421 = arith.mulf %419, %420 : vector<8x256xf32>
    %422 = arith.addf %417, %421 : vector<8x256xf32>
    %423 = vector.extract_strided_slice %261 {offsets = [6, 0], sizes = [1, 256], strides = [1, 1]} : vector<8x256xf32> to vector<1x256xf32>
    %424 = vector.broadcast %26 : vector<8x1xf32> to vector<8x256xf32>
    %425 = vector.broadcast %423 : vector<1x256xf32> to vector<8x256xf32>
    %426 = arith.mulf %424, %425 : vector<8x256xf32>
    %427 = arith.addf %422, %426 : vector<8x256xf32>
    %428 = vector.extract_strided_slice %261 {offsets = [7, 0], sizes = [1, 256], strides = [1, 1]} : vector<8x256xf32> to vector<1x256xf32>
    %429 = vector.broadcast %27 : vector<8x1xf32> to vector<8x256xf32>
    %430 = vector.broadcast %428 : vector<1x256xf32> to vector<8x256xf32>
    %431 = arith.mulf %429, %430 : vector<8x256xf32>
    %432 = arith.addf %427, %431 : vector<8x256xf32>
    %cst_92 = arith.constant 0.000000e+00 : f32
    %433 = vector.broadcast %cst_92 : f32 to vector<8x256xf32>
    %434 = arith.subf %433, %432 : vector<8x256xf32>
    %435 = math.exp %434 : vector<8x256xf32>
    %cst_93 = arith.constant 1.000000e+00 : f32
    %436 = vector.broadcast %cst_93 : f32 to vector<8x256xf32>
    %437 = arith.addf %436, %435 : vector<8x256xf32>
    %cst_94 = arith.constant 1.000000e+00 : f32
    %438 = vector.broadcast %cst_94 : f32 to vector<8x256xf32>
    %439 = arith.divf %438, %437 : vector<8x256xf32>
    %440 = arith.mulf %432, %439 : vector<8x256xf32>
    %c1_95 = arith.constant 1 : index
    %c0_96 = arith.constant 0 : index
    %c0_97 = arith.constant 0 : index
    %441 = vector.load %arg5[%c1_95, %c0_96, %c0_97] : memref<2x8x256xf32, #tpu.memory_space<vmem>>, vector<1x8x256xf32>
    %442 = vector.shape_cast %441 : vector<1x8x256xf32> to vector<8x256xf32>
    %443 = vector.shape_cast %440 : vector<8x256xf32> to vector<1x8x256xf32>
    tpu.vector_store %arg5[%c1_95, %c0_96, %c0_97], %443 {strides = array<i32>} : memref<2x8x256xf32, #tpu.memory_space<vmem>>, vector<1x8x256xf32>,
    return
  }
}

</mosaic_0001>

<llo_original>
// kernel: sppelan_forward.1
$region0: #{sppelan_forward.1}
  #allocation0 [shape = 'u32[]', space=smem, size = 0x4, offset = 0x4, fixed_abs, tag = 'smem constant byte address 0x4 - core index']
  #allocation1 [shape = 'u32[72,128]{1,0:T(1,128)}', space=vmem, size = 0x9000, scoped, tag = 'internal scratch']
  %s0 = inlined_call_operand.vmem [shape: f32[2,4,256], index: 0, kind: input, shape index: {}]
  %s1 = inlined_call_operand.vmem [shape: f32[4,4], index: 1, kind: input, shape index: {}]
  %s2 = inlined_call_operand.vmem [shape: f32[4,1], index: 2, kind: input, shape index: {}]
  %s3 = inlined_call_operand.vmem [shape: f32[8,16], index: 3, kind: input, shape index: {}]
  %s4 = inlined_call_operand.vmem [shape: f32[8,1], index: 4, kind: input, shape index: {}]
  %s5 = inlined_call_operand.vmem [shape: f32[2,8,256], index: 5, kind: output, shape index: {}]
  %s6 = sld [smem:[#allocation0]]
  $region30: #{sppelan_forward.1} parent=0
    _
  %s8 = ssub.s32 1, %s6
  %s9 = scalar_select 0, %s8, %s6
  // Predicated region
  $region2: #{sppelan_forward.1} parent=0 // pred_check
    _
  $region3: #{sppelan_forward.1} parent=0 // pred_check_branch
    %11 = sbr.rel (0) target = $region5
  $region4: #{sppelan_forward.1} parent=0 // pred_region
    _
  $region5: #{sppelan_forward.1} parent=0 // pred_fallthru
    _
  // Predicated region
  $region6: #{sppelan_forward.1} parent=0 // pred_check
    _
  $region7: #{sppelan_forward.1} parent=0 // pred_check_branch
    %13 = sbr.rel (0) target = $region9
  $region8: #{sppelan_forward.1} parent=0 // pred_region
    _
  $region9: #{sppelan_forward.1} parent=0 // pred_fallthru
    _
  // Predicated region
  $region10: #{sppelan_forward.1} parent=0 // pred_check
    _
  $region11: #{sppelan_forward.1} parent=0 // pred_check_branch
    %15 = sbr.rel (0) target = $region13
  $region12: #{sppelan_forward.1} parent=0 // pred_region
    _
  $region13: #{sppelan_forward.1} parent=0 // pred_fallthru
    _
  // Predicated region
  $region14: #{sppelan_forward.1} parent=0 // pred_check
    _
  $region15: #{sppelan_forward.1} parent=0 // pred_check_branch
    %17 = sbr.rel (0) target = $region17
  $region16: #{sppelan_forward.1} parent=0 // pred_region
    _
  $region17: #{sppelan_forward.1} parent=0 // pred_fallthru
    _
  // Predicated region
  $region18: #{sppelan_forward.1} parent=0 // pred_check
    _
  $region19: #{sppelan_forward.1} parent=0 // pred_check_branch
    %19 = sbr.rel (0) target = $region21
  $region20: #{sppelan_forward.1} parent=0 // pred_region
    _
  $region21: #{sppelan_forward.1} parent=0 // pred_fallthru
    _
  %v20 = vld [vmem:[%s1] sm:$0xf]
  %v21 = vld [vmem:[%s2] sm:$0xf]
  %v22 = vld [vmem:[%s3] sm:$0xff]
  %v23 = vld [vmem:[%s4] sm:$0xff]
  %25 = vset.pattern.permute.xlu0 0
  %26 = vperm.xlu0 %25, %v21
  %v27 = vpop.permute.xlu0 %26
  %30 = vset.pattern.permute.xlu0 0
  %31 = vperm.xlu0 %30, %v23
  %v32 = vpop.permute.xlu0 %31
  %v34 = vld [vmem:[%s0] sm:$0xff]
  %36 = vset.pattern.permute.xlu0 0
  %37 = vperm.xlu0 %36, %v20
  %v38 = vpop.permute.xlu0 %37
  %v41 = vperm.slane %v34, 0
  %v42 = vperm.slane %v34, 4
  %v45 = vperm.slane %v41, 0
  %v46 = vperm.slane %v42, 0
  %v47 = vmul.f32 %v38, %v45
  %v48 = vmul.f32 %v38, %v46
  %v49 = vadd.f32 %v27, %v47
  %v50 = vadd.f32 %v27, %v48
  %51 = vset.pattern.permute.xlu0 1
  %52 = vperm.xlu0 %51, %v20
  %v53 = vpop.permute.xlu0 %52
  %v55 = vperm.slane %v34, 1
  %v56 = vperm.slane %v34, 5
  %v59 = vperm.slane %v55, 1
  %v60 = vperm.slane %v56, 1
  %v61 = vmul.f32 %v53, %v59
  %v62 = vmul.f32 %v53, %v60
  %v63 = vadd.f32 %v49, %v61
  %v64 = vadd.f32 %v50, %v62
  %65 = vset.pattern.permute.xlu0 2
  %66 = vperm.xlu0 %65, %v20
  %v67 = vpop.permute.xlu0 %66
  %v69 = vperm.slane %v34, 2
  %v70 = vperm.slane %v34, 6
  %v73 = vperm.slane %v69, 2
  %v74 = vperm.slane %v70, 2
  %v75 = vmul.f32 %v67, %v73
  %v76 = vmul.f32 %v67, %v74
  %v77 = vadd.f32 %v63, %v75
  %v78 = vadd.f32 %v64, %v76
  %79 = vset.pattern.permute.xlu0 3
  %80 = vperm.xlu0 %79, %v20
  %v81 = vpop.permute.xlu0 %80
  %v83 = vperm.slane %v34, 3
  %v84 = vperm.slane %v34, 7
  %v87 = vperm.slane %v83, 3
  %v88 = vperm.slane %v84, 3
  %v89 = vmul.f32 %v81, %v87
  %v90 = vmul.f32 %v81, %v88
  %v91 = vadd.f32 %v77, %v89
  %v92 = vadd.f32 %v78, %v90
  %v93 = vsub.f32 0.0, %v91
  %v94 = vsub.f32 0.0, %v92
  %v95 = vmul.f32 %v93, 1.442695
  %v96 = vpow.pop %v95
  %v97 = vmul.f32 %v94, 1.442695
  %v98 = vpow.pop %v97
  %v99 = vadd.f32 %v96, 1.0
  %v100 = vadd.f32 %v98, 1.0
  %v101 = vrcp.pop %v99
  %v102 = vmul.f32 %v99, %v101
  %v103 = vsub.f32 1.0, %v102
  %v104 = vmul.f32 %v101, %v103
  %v105 = vadd.f32 %v101, %v104
  %vm106 = vweird.f32 %v99
  %vm107 = vweird.f32 %v101
  %vm108 = vmor %vm106, %vm107
  %v109 = vsel %vm108, %v101, %v105
  %v110 = vand.u32 2147483647, %v99
  %vm111 = vcmp.eq.f32.partialorder %v110, 8.507059e+37
  %v112 = vand.u32 %v99, 2147483648
  %v113 = vor.u32 1.1754944e-38, %v112
  %v114 = vsel %vm111, %v113, %v109
  %v115 = vmul.f32 1.0, %v114
  %v116 = vrcp.pop %v100
  %v117 = vmul.f32 %v100, %v116
  %v118 = vsub.f32 1.0, %v117
  %v119 = vmul.f32 %v116, %v118
  %v120 = vadd.f32 %v116, %v119
  %vm121 = vweird.f32 %v100
  %vm122 = vweird.f32 %v116
  %vm123 = vmor %vm121, %vm122
  %v124 = vsel %vm123, %v116, %v120
  %v125 = vand.u32 2147483647, %v100
  %vm126 = vcmp.eq.f32.partialorder %v125, 8.507059e+37
  %v127 = vand.u32 %v100, 2147483648
  %v128 = vor.u32 1.1754944e-38, %v127
  %v129 = vsel %vm126, %v128, %v124
  %v130 = vmul.f32 1.0, %v129
  %v131 = vmul.f32 %v91, %v115
  %v132 = vmul.f32 %v92, %v130
  %s133 = scalar_lea.vmem %s0, 8
  %v134 = vld [vmem:[%s133] sm:$0xff]
  %v136 = vperm.slane %v134, 0
  %v137 = vperm.slane %v134, 4
  %v140 = vperm.slane %v136, 0
  %v141 = vperm.slane %v137, 0
  %v142 = vmul.f32 %v38, %v140
  %v143 = vmul.f32 %v38, %v141
  %v144 = vadd.f32 %v27, %v142
  %v145 = vadd.f32 %v27, %v143
  %v146 = vperm.slane %v134, 1
  %v147 = vperm.slane %v134, 5
  %v150 = vperm.slane %v146, 1
  %v151 = vperm.slane %v147, 1
  %v152 = vmul.f32 %v53, %v150
  %v153 = vmul.f32 %v53, %v151
  %v154 = vadd.f32 %v144, %v152
  %v155 = vadd.f32 %v145, %v153
  %v156 = vperm.slane %v134, 2
  %v157 = vperm.slane %v134, 6
  %v160 = vperm.slane %v156, 2
  %v161 = vperm.slane %v157, 2
  %v162 = vmul.f32 %v67, %v160
  %v163 = vmul.f32 %v67, %v161
  %v164 = vadd.f32 %v154, %v162
  %v165 = vadd.f32 %v155, %v163
  %v166 = vperm.slane %v134, 3
  %v167 = vperm.slane %v134, 7
  %v170 = vperm.slane %v166, 3
  %v171 = vperm.slane %v167, 3
  %v172 = vmul.f32 %v81, %v170
  %v173 = vmul.f32 %v81, %v171
  %v174 = vadd.f32 %v164, %v172
  %v175 = vadd.f32 %v165, %v173
  %v176 = vsub.f32 0.0, %v174
  %v177 = vsub.f32 0.0, %v175
  %v178 = vmul.f32 %v176, 1.442695
  %v179 = vpow.pop %v178
  %v180 = vmul.f32 %v177, 1.442695
  %v181 = vpow.pop %v180
  %v182 = vadd.f32 %v179, 1.0
  %v183 = vadd.f32 %v181, 1.0
  %v184 = vrcp.pop %v182
  %v185 = vmul.f32 %v182, %v184
  %v186 = vsub.f32 1.0, %v185
  %v187 = vmul.f32 %v184, %v186
  %v188 = vadd.f32 %v184, %v187
  %vm189 = vweird.f32 %v182
  %vm190 = vweird.f32 %v184
  %vm191 = vmor %vm189, %vm190
  %v192 = vsel %vm191, %v184, %v188
  %v193 = vand.u32 2147483647, %v182
  %vm194 = vcmp.eq.f32.partialorder %v193, 8.507059e+37
  %v195 = vand.u32 %v182, 2147483648
  %v196 = vor.u32 1.1754944e-38, %v195
  %v197 = vsel %vm194, %v196, %v192
  %v198 = vmul.f32 1.0, %v197
  %v199 = vrcp.pop %v183
  %v200 = vmul.f32 %v183, %v199
  %v201 = vsub.f32 1.0, %v200
  %v202 = vmul.f32 %v199, %v201
  %v203 = vadd.f32 %v199, %v202
  %vm204 = vweird.f32 %v183
  %vm205 = vweird.f32 %v199
  %vm206 = vmor %vm204, %vm205
  %v207 = vsel %vm206, %v199, %v203
  %v208 = vand.u32 2147483647, %v183
  %vm209 = vcmp.eq.f32.partialorder %v208, 8.507059e+37
  %v210 = vand.u32 %v183, 2147483648
  %v211 = vor.u32 1.1754944e-38, %v210
  %v212 = vsel %vm209, %v211, %v207
  %v213 = vmul.f32 1.0, %v212
  %v214 = vmul.f32 %v174, %v198
  %v215 = vmul.f32 %v175, %v213
  %v218 = vrot.slane %v214, 4
  %v219 = vrot.slane %v215, 4
  %vm222 = vcmask 1043456
  %v223 = vsel %vm222, %v131, %v218
  %v224 = vsel %vm222, %v132, %v219
  %v225 = vlaneseq
  %v226 = vand.u32 %v225, 127
  %v227 = vadd.s32 %v226, 128
  %v228 = vand.u32 %v226, 15
  %v229 = vand.u32 %v227, 15
  %v230 = vshra.s32 %v226, 4
  %v231 = vshra.s32 %v227, 4
  %v232 = vadd.s32 %v228, 4294967294
  %v233 = vadd.s32 %v229, 4294967294
  %vm234 = vcmp.ge.s32.totalorder %v232, 0
  %vm235 = vcmp.ge.s32.totalorder %v233, 0
  %vm236 = vcmp.lt.s32.totalorder %v232, 16
  %vm237 = vcmp.lt.s32.totalorder %v233, 16
  %vm238 = vmand %vm234, %vm236
  %vm239 = vmand %vm235, %vm237
  %v240 = vadd.s32 %v228, 4294967295
  %v241 = vadd.s32 %v229, 4294967295
  %vm242 = vcmp.ge.s32.totalorder %v240, 0
  %vm243 = vcmp.ge.s32.totalorder %v241, 0
  %vm244 = vcmp.lt.s32.totalorder %v240, 16
  %vm245 = vcmp.lt.s32.totalorder %v241, 16
  %vm246 = vmand %vm242, %vm244
  %vm247 = vmand %vm243, %vm245
  %v248 = vadd.s32 %v228, 1
  %v249 = vadd.s32 %v229, 1
  %vm250 = vcmp.ge.s32.totalorder %v248, 0
  %vm251 = vcmp.ge.s32.totalorder %v249, 0
  %vm252 = vcmp.lt.s32.totalorder %v248, 16
  %vm253 = vcmp.lt.s32.totalorder %v249, 16
  %vm254 = vmand %vm250, %vm252
  %vm255 = vmand %vm251, %vm253
  %v256 = vadd.s32 %v228, 2
  %v257 = vadd.s32 %v229, 2
  %vm258 = vcmp.ge.s32.totalorder %v256, 0
  %vm259 = vcmp.ge.s32.totalorder %v257, 0
  %vm260 = vcmp.lt.s32.totalorder %v256, 16
  %vm261 = vcmp.lt.s32.totalorder %v257, 16
  %vm262 = vmand %vm258, %vm260
  %vm263 = vmand %vm259, %vm261
  %v264 = vadd.s32 %v230, 4294967294
  %v265 = vadd.s32 %v231, 4294967294
  %vm266 = vcmp.ge.s32.totalorder %v264, 0
  %vm267 = vcmp.ge.s32.totalorder %v265, 0
  %vm268 = vcmp.lt.s32.totalorder %v264, 16
  %vm269 = vcmp.lt.s32.totalorder %v265, 16
  %vm270 = vmand %vm266, %vm268
  %vm271 = vmand %vm267, %vm269
  %v272 = vadd.s32 %v230, 4294967295
  %v273 = vadd.s32 %v231, 4294967295
  %vm274 = vcmp.ge.s32.totalorder %v272, 0
  %vm275 = vcmp.ge.s32.totalorder %v273, 0
  %vm276 = vcmp.lt.s32.totalorder %v272, 16
  %vm277 = vcmp.lt.s32.totalorder %v273, 16
  %vm278 = vmand %vm274, %vm276
  %vm279 = vmand %vm275, %vm277
  %v280 = vadd.s32 %v230, 1
  %v281 = vadd.s32 %v231, 1
  %vm282 = vcmp.ge.s32.totalorder %v280, 0
  %vm283 = vcmp.ge.s32.totalorder %v281, 0
  %vm284 = vcmp.lt.s32.totalorder %v280, 16
  %vm285 = vcmp.lt.s32.totalorder %v281, 16
  %vm286 = vmand %vm282, %vm284
  %vm287 = vmand %vm283, %vm285
  %v288 = vadd.s32 %v230, 2
  %v289 = vadd.s32 %v231, 2
  %vm290 = vcmp.ge.s32.totalorder %v288, 0
  %vm291 = vcmp.ge.s32.totalorder %v289, 0
  %vm292 = vcmp.lt.s32.totalorder %v288, 16
  %vm293 = vcmp.lt.s32.totalorder %v289, 16
  %vm294 = vmand %vm290, %vm292
  %vm295 = vmand %vm291, %vm293
  %296 = vrot.lane.b32.xlu0 %v223, 2
  %v297 = vpop.permute.xlu0 %296
  %298 = vrot.lane.b32.xlu0 %v224, 2
  %v299 = vpop.permute.xlu0 %298
  %vm300 = vcmp.lt.s32.totalorder %v226, 2
  %v301 = vsel %vm300, %v297, %v299
  %v302 = vsel %vm300, %v299, %v297
  %v303 = vsel %vm238, %v302, -inf
  %v304 = vsel %vm239, %v301, -inf
  %v305 = vmax.f32 %v223, %v303
  %v306 = vmax.f32 %v224, %v304
  %307 = vrot.lane.b32.xlu0 %v223, 1
  %v308 = vpop.permute.xlu0 %307
  %309 = vrot.lane.b32.xlu0 %v224, 1
  %v310 = vpop.permute.xlu0 %309
  %vm311 = vcmp.lt.s32.totalorder %v226, 1
  %v312 = vsel %vm311, %v308, %v310
  %v313 = vsel %vm311, %v310, %v308
  %v314 = vsel %vm246, %v313, -inf
  %v315 = vsel %vm247, %v312, -inf
  %v316 = vmax.f32 %v305, %v314
  %v317 = vmax.f32 %v306, %v315
  %318 = vrot.lane.b32.xlu0 %v223, 127
  %v319 = vpop.permute.xlu0 %318
  %320 = vrot.lane.b32.xlu0 %v224, 127
  %v321 = vpop.permute.xlu0 %320
  %vm322 = vcmp.lt.s32.totalorder %v226, 127
  %v323 = vsel %vm322, %v319, %v321
  %v324 = vsel %vm322, %v321, %v319
  %v325 = vsel %vm254, %v323, -inf
  %v326 = vsel %vm255, %v324, -inf
  %v327 = vmax.f32 %v316, %v325
  %v328 = vmax.f32 %v317, %v326
  %329 = vrot.lane.b32.xlu0 %v223, 126
  %v330 = vpop.permute.xlu0 %329
  %331 = vrot.lane.b32.xlu0 %v224, 126
  %v332 = vpop.permute.xlu0 %331
  %vm333 = vcmp.lt.s32.totalorder %v226, 126
  %v334 = vsel %vm333, %v330, %v332
  %v335 = vsel %vm333, %v332, %v330
  %v336 = vsel %vm262, %v334, -inf
  %v337 = vsel %vm263, %v335, -inf
  %v338 = vmax.f32 %v327, %v336
  %v339 = vmax.f32 %v328, %v337
  %340 = vrot.lane.b32.xlu0 %v338, 32
  %v341 = vpop.permute.xlu0 %340
  %342 = vrot.lane.b32.xlu0 %v339, 32
  %v343 = vpop.permute.xlu0 %342
  %vm344 = vcmp.lt.s32.totalorder %v226, 32
  %v345 = vsel %vm344, %v341, %v343
  %v346 = vsel %vm344, %v343, %v341
  %v347 = vsel %vm270, %v346, -inf
  %v348 = vsel %vm271, %v345, -inf
  %v349 = vmax.f32 %v338, %v347
  %v350 = vmax.f32 %v339, %v348
  %351 = vrot.lane.b32.xlu0 %v338, 16
  %v352 = vpop.permute.xlu0 %351
  %353 = vrot.lane.b32.xlu0 %v339, 16
  %v354 = vpop.permute.xlu0 %353
  %vm355 = vcmp.lt.s32.totalorder %v226, 16
  %v356 = vsel %vm355, %v352, %v354
  %v357 = vsel %vm355, %v354, %v352
  %v358 = vsel %vm278, %v357, -inf
  %v359 = vsel %vm279, %v356, -inf
  %v360 = vmax.f32 %v349, %v358
  %v361 = vmax.f32 %v350, %v359
  %362 = vrot.lane.b32.xlu0 %v338, 112
  %v363 = vpop.permute.xlu0 %362
  %364 = vrot.lane.b32.xlu0 %v339, 112
  %v365 = vpop.permute.xlu0 %364
  %vm366 = vcmp.lt.s32.totalorder %v226, 112
  %v367 = vsel %vm366, %v363, %v365
  %v368 = vsel %vm366, %v365, %v363
  %v369 = vsel %vm286, %v367, -inf
  %v370 = vsel %vm287, %v368, -inf
  %v371 = vmax.f32 %v360, %v369
  %v372 = vmax.f32 %v361, %v370
  %373 = vrot.lane.b32.xlu0 %v338, 96
  %v374 = vpop.permute.xlu0 %373
  %375 = vrot.lane.b32.xlu0 %v339, 96
  %v376 = vpop.permute.xlu0 %375
  %vm377 = vcmp.lt.s32.totalorder %v226, 96
  %v378 = vsel %vm377, %v374, %v376
  %v379 = vsel %vm377, %v376, %v374
  %v380 = vsel %vm294, %v378, -inf
  %v381 = vsel %vm295, %v379, -inf
  %v382 = vmax.f32 %v371, %v380
  %v383 = vmax.f32 %v372, %v381
  %384 = vrot.lane.b32.xlu0 %v382, 2
  %v385 = vpop.permute.xlu0 %384
  %386 = vrot.lane.b32.xlu0 %v383, 2
  %v387 = vpop.permute.xlu0 %386
  %v388 = vsel %vm300, %v385, %v387
  %v389 = vsel %vm300, %v387, %v385
  %v390 = vsel %vm238, %v389, -inf
  %v391 = vsel %vm239, %v388, -inf
  %v392 = vmax.f32 %v382, %v390
  %v393 = vmax.f32 %v383, %v391
  %394 = vrot.lane.b32.xlu0 %v382, 1
  %v395 = vpop.permute.xlu0 %394
  %396 = vrot.lane.b32.xlu0 %v383, 1
  %v397 = vpop.permute.xlu0 %396
  %v398 = vsel %vm311, %v395, %v397
  %v399 = vsel %vm311, %v397, %v395
  %v400 = vsel %vm246, %v399, -inf
  %v401 = vsel %vm247, %v398, -inf
  %v402 = vmax.f32 %v392, %v400
  %v403 = vmax.f32 %v393, %v401
  %404 = vrot.lane.b32.xlu0 %v382, 127
  %v405 = vpop.permute.xlu0 %404
  %406 = vrot.lane.b32.xlu0 %v383, 127
  %v407 = vpop.permute.xlu0 %406
  %v408 = vsel %vm322, %v405, %v407
  %v409 = vsel %vm322, %v407, %v405
  %v410 = vsel %vm254, %v408, -inf
  %v411 = vsel %vm255, %v409, -inf
  %v412 = vmax.f32 %v402, %v410
  %v413 = vmax.f32 %v403, %v411
  %414 = vrot.lane.b32.xlu0 %v382, 126
  %v415 = vpop.permute.xlu0 %414
  %416 = vrot.lane.b32.xlu0 %v383, 126
  %v417 = vpop.permute.xlu0 %416
  %v418 = vsel %vm333, %v415, %v417
  %v419 = vsel %vm333, %v417, %v415
  %v420 = vsel %vm262, %v418, -inf
  %v421 = vsel %vm263, %v419, -inf
  %v422 = vmax.f32 %v412, %v420
  %v423 = vmax.f32 %v413, %v421
  %424 = vrot.lane.b32.xlu0 %v422, 32
  %v425 = vpop.permute.xlu0 %424
  %426 = vrot.lane.b32.xlu0 %v423, 32
  %v427 = vpop.permute.xlu0 %426
  %v428 = vsel %vm344, %v425, %v427
  %v429 = vsel %vm344, %v427, %v425
  %v430 = vsel %vm270, %v429, -inf
  %v431 = vsel %vm271, %v428, -inf
  %v432 = vmax.f32 %v422, %v430
  %v433 = vmax.f32 %v423, %v431
  %434 = vrot.lane.b32.xlu0 %v422, 16
  %v435 = vpop.permute.xlu0 %434
  %436 = vrot.lane.b32.xlu0 %v423, 16
  %v437 = vpop.permute.xlu0 %436
  %v438 = vsel %vm355, %v435, %v437
  %v439 = vsel %vm355, %v437, %v435
  %v440 = vsel %vm278, %v439, -inf
  %v441 = vsel %vm279, %v438, -inf
  %v442 = vmax.f32 %v432, %v440
  %v443 = vmax.f32 %v433, %v441
  %444 = vrot.lane.b32.xlu0 %v422, 112
  %v445 = vpop.permute.xlu0 %444
  %446 = vrot.lane.b32.xlu0 %v423, 112
  %v447 = vpop.permute.xlu0 %446
  %v448 = vsel %vm366, %v445, %v447
  %v449 = vsel %vm366, %v447, %v445
  %v450 = vsel %vm286, %v448, -inf
  %v451 = vsel %vm287, %v449, -inf
  %v452 = vmax.f32 %v442, %v450
  %v453 = vmax.f32 %v443, %v451
  %454 = vrot.lane.b32.xlu0 %v422, 96
  %v455 = vpop.permute.xlu0 %454
  %456 = vrot.lane.b32.xlu0 %v423, 96
  %v457 = vpop.permute.xlu0 %456
  %v458 = vsel %vm377, %v455, %v457
  %v459 = vsel %vm377, %v457, %v455
  %v460 = vsel %vm294, %v458, -inf
  %v461 = vsel %vm295, %v459, -inf
  %v462 = vmax.f32 %v452, %v460
  %v463 = vmax.f32 %v453, %v461
  %464 = vrot.lane.b32.xlu0 %v462, 2
  %v465 = vpop.permute.xlu0 %464
  %466 = vrot.lane.b32.xlu0 %v463, 2
  %v467 = vpop.permute.xlu0 %466
  %v468 = vsel %vm300, %v465, %v467
  %v469 = vsel %vm300, %v467, %v465
  %v470 = vsel %vm238, %v469, -inf
  %v471 = vsel %vm239, %v468, -inf
  %v472 = vmax.f32 %v462, %v470
  %v473 = vmax.f32 %v463, %v471
  %474 = vrot.lane.b32.xlu0 %v462, 1
  %v475 = vpop.permute.xlu0 %474
  %476 = vrot.lane.b32.xlu0 %v463, 1
  %v477 = vpop.permute.xlu0 %476
  %v478 = vsel %vm311, %v475, %v477
  %v479 = vsel %vm311, %v477, %v475
  %v480 = vsel %vm246, %v479, -inf
  %v481 = vsel %vm247, %v478, -inf
  %v482 = vmax.f32 %v472, %v480
  %v483 = vmax.f32 %v473, %v481
  %484 = vrot.lane.b32.xlu0 %v462, 127
  %v485 = vpop.permute.xlu0 %484
  %486 = vrot.lane.b32.xlu0 %v463, 127
  %v487 = vpop.permute.xlu0 %486
  %v488 = vsel %vm322, %v485, %v487
  %v489 = vsel %vm322, %v487, %v485
  %v490 = vsel %vm254, %v488, -inf
  %v491 = vsel %vm255, %v489, -inf
  %v492 = vmax.f32 %v482, %v490
  %v493 = vmax.f32 %v483, %v491
  %494 = vrot.lane.b32.xlu0 %v462, 126
  %v495 = vpop.permute.xlu0 %494
  %496 = vrot.lane.b32.xlu0 %v463, 126
  %v497 = vpop.permute.xlu0 %496
  %v498 = vsel %vm333, %v495, %v497
  %v499 = vsel %vm333, %v497, %v495
  %v500 = vsel %vm262, %v498, -inf
  %v501 = vsel %vm263, %v499, -inf
  %v502 = vmax.f32 %v492, %v500
  %v503 = vmax.f32 %v493, %v501
  %504 = vrot.lane.b32.xlu0 %v502, 32
  %v505 = vpop.permute.xlu0 %504
  %506 = vrot.lane.b32.xlu0 %v503, 32
  %v507 = vpop.permute.xlu0 %506
  %v508 = vsel %vm344, %v505, %v507
  %v509 = vsel %vm344, %v507, %v505
  %v510 = vsel %vm270, %v509, -inf
  %v511 = vsel %vm271, %v508, -inf
  %v512 = vmax.f32 %v502, %v510
  %v513 = vmax.f32 %v503, %v511
  %514 = vrot.lane.b32.xlu0 %v502, 16
  %v515 = vpop.permute.xlu0 %514
  %516 = vrot.lane.b32.xlu0 %v503, 16
  %v517 = vpop.permute.xlu0 %516
  %v518 = vsel %vm355, %v515, %v517
  %v519 = vsel %vm355, %v517, %v515
  %v520 = vsel %vm278, %v519, -inf
  %v521 = vsel %vm279, %v518, -inf
  %v522 = vmax.f32 %v512, %v520
  %v523 = vmax.f32 %v513, %v521
  %524 = vrot.lane.b32.xlu0 %v502, 112
  %v525 = vpop.permute.xlu0 %524
  %526 = vrot.lane.b32.xlu0 %v503, 112
  %v527 = vpop.permute.xlu0 %526
  %v528 = vsel %vm366, %v525, %v527
  %v529 = vsel %vm366, %v527, %v525
  %v530 = vsel %vm286, %v528, -inf
  %v531 = vsel %vm287, %v529, -inf
  %v532 = vmax.f32 %v522, %v530
  %v533 = vmax.f32 %v523, %v531
  %534 = vrot.lane.b32.xlu0 %v502, 96
  %v535 = vpop.permute.xlu0 %534
  %536 = vrot.lane.b32.xlu0 %v503, 96
  %v537 = vpop.permute.xlu0 %536
  %v538 = vsel %vm377, %v535, %v537
  %v539 = vsel %vm377, %v537, %v535
  %v540 = vsel %vm294, %v538, -inf
  %v541 = vsel %vm295, %v539, -inf
  %v542 = vmax.f32 %v532, %v540
  %v543 = vmax.f32 %v533, %v541
  %545 = vset.pattern.permute.xlu0 0
  %546 = vperm.xlu0 %545, %v22
  %v547 = vpop.permute.xlu0 %546
  %v549 = vperm.slane %v223, 0
  %v550 = vperm.slane %v224, 0
  %v551 = vmul.f32 %v547, %v549
  %v552 = vmul.f32 %v547, %v550
  %v553 = vadd.f32 %v32, %v551
  %v554 = vadd.f32 %v32, %v552
  %555 = vset.pattern.permute.xlu0 1
  %556 = vperm.xlu0 %555, %v22
  %v557 = vpop.permute.xlu0 %556
  %v559 = vperm.slane %v223, 1
  %v560 = vperm.slane %v224, 1
  %v561 = vmul.f32 %v557, %v559
  %v562 = vmul.f32 %v557, %v560
  %v563 = vadd.f32 %v553, %v561
  %v564 = vadd.f32 %v554, %v562
  %565 = vset.pattern.permute.xlu0 2
  %566 = vperm.xlu0 %565, %v22
  %v567 = vpop.permute.xlu0 %566
  %v569 = vperm.slane %v223, 2
  %v570 = vperm.slane %v224, 2
  %v571 = vmul.f32 %v567, %v569
  %v572 = vmul.f32 %v567, %v570
  %v573 = vadd.f32 %v563, %v571
  %v574 = vadd.f32 %v564, %v572
  %575 = vset.pattern.permute.xlu0 3
  %576 = vperm.xlu0 %575, %v22
  %v577 = vpop.permute.xlu0 %576
  %v579 = vperm.slane %v223, 3
  %v580 = vperm.slane %v224, 3
  %v581 = vmul.f32 %v577, %v579
  %v582 = vmul.f32 %v577, %v580
  %v583 = vadd.f32 %v573, %v581
  %v584 = vadd.f32 %v574, %v582
  %585 = vset.pattern.permute.xlu0 4
  %586 = vperm.xlu0 %585, %v22
  %v587 = vpop.permute.xlu0 %586
  %v589 = vperm.slane %v382, 0
  %v590 = vperm.slane %v383, 0
  %v591 = vmul.f32 %v587, %v589
  %v592 = vmul.f32 %v587, %v590
  %v593 = vadd.f32 %v583, %v591
  %v594 = vadd.f32 %v584, %v592
  %595 = vset.pattern.permute.xlu0 5
  %596 = vperm.xlu0 %595, %v22
  %v597 = vpop.permute.xlu0 %596
  %v599 = vperm.slane %v382, 1
  %v600 = vperm.slane %v383, 1
  %v601 = vmul.f32 %v597, %v599
  %v602 = vmul.f32 %v597, %v600
  %v603 = vadd.f32 %v593, %v601
  %v604 = vadd.f32 %v594, %v602
  %605 = vset.pattern.permute.xlu0 6
  %606 = vperm.xlu0 %605, %v22
  %v607 = vpop.permute.xlu0 %606
  %v609 = vperm.slane %v382, 2
  %v610 = vperm.slane %v383, 2
  %v611 = vmul.f32 %v607, %v609
  %v612 = vmul.f32 %v607, %v610
  %v613 = vadd.f32 %v603, %v611
  %v614 = vadd.f32 %v604, %v612
  %615 = vset.pattern.permute.xlu0 7
  %616 = vperm.xlu0 %615, %v22
  %v617 = vpop.permute.xlu0 %616
  %v619 = vperm.slane %v382, 3
  %v620 = vperm.slane %v383, 3
  %v621 = vmul.f32 %v617, %v619
  %v622 = vmul.f32 %v617, %v620
  %v623 = vadd.f32 %v613, %v621
  %v624 = vadd.f32 %v614, %v622
  %625 = vset.pattern.permute.xlu0 8
  %626 = vperm.xlu0 %625, %v22
  %v627 = vpop.permute.xlu0 %626
  %v629 = vperm.slane %v462, 0
  %v630 = vperm.slane %v463, 0
  %v631 = vmul.f32 %v627, %v629
  %v632 = vmul.f32 %v627, %v630
  %v633 = vadd.f32 %v623, %v631
  %v634 = vadd.f32 %v624, %v632
  %635 = vset.pattern.permute.xlu0 9
  %636 = vperm.xlu0 %635, %v22
  %v637 = vpop.permute.xlu0 %636
  %v639 = vperm.slane %v462, 1
  %v640 = vperm.slane %v463, 1
  %v641 = vmul.f32 %v637, %v639
  %v642 = vmul.f32 %v637, %v640
  %v643 = vadd.f32 %v633, %v641
  %v644 = vadd.f32 %v634, %v642
  %645 = vset.pattern.permute.xlu0 10
  %646 = vperm.xlu0 %645, %v22
  %v647 = vpop.permute.xlu0 %646
  %v649 = vperm.slane %v462, 2
  %v650 = vperm.slane %v463, 2
  %v651 = vmul.f32 %v647, %v649
  %v652 = vmul.f32 %v647, %v650
  %v653 = vadd.f32 %v643, %v651
  %v654 = vadd.f32 %v644, %v652
  %655 = vset.pattern.permute.xlu0 11
  %656 = vperm.xlu0 %655, %v22
  %v657 = vpop.permute.xlu0 %656
  %v659 = vperm.slane %v462, 3
  %v660 = vperm.slane %v463, 3
  %v661 = vmul.f32 %v657, %v659
  %v662 = vmul.f32 %v657, %v660
  %v663 = vadd.f32 %v653, %v661
  %v664 = vadd.f32 %v654, %v662
  %665 = vset.pattern.permute.xlu0 12
  %666 = vperm.xlu0 %665, %v22
  %v667 = vpop.permute.xlu0 %666
  %v669 = vperm.slane %v542, 0
  %v670 = vperm.slane %v543, 0
  %v671 = vmul.f32 %v667, %v669
  %v672 = vmul.f32 %v667, %v670
  %v673 = vadd.f32 %v663, %v671
  %v674 = vadd.f32 %v664, %v672
  %675 = vset.pattern.permute.xlu0 13
  %676 = vperm.xlu0 %675, %v22
  %v677 = vpop.permute.xlu0 %676
  %v679 = vperm.slane %v542, 1
  %v680 = vperm.slane %v543, 1
  %v681 = vmul.f32 %v677, %v679
  %v682 = vmul.f32 %v677, %v680
  %v683 = vadd.f32 %v673, %v681
  %v684 = vadd.f32 %v674, %v682
  %685 = vset.pattern.permute.xlu0 14
  %686 = vperm.xlu0 %685, %v22
  %v687 = vpop.permute.xlu0 %686
  %v689 = vperm.slane %v542, 2
  %v690 = vperm.slane %v543, 2
  %v691 = vmul.f32 %v687, %v689
  %v692 = vmul.f32 %v687, %v690
  %v693 = vadd.f32 %v683, %v691
  %v694 = vadd.f32 %v684, %v692
  %695 = vset.pattern.permute.xlu0 15
  %696 = vperm.xlu0 %695, %v22
  %v697 = vpop.permute.xlu0 %696
  %v699 = vperm.slane %v542, 3
  %v700 = vperm.slane %v543, 3
  %v701 = vmul.f32 %v697, %v699
  %v702 = vmul.f32 %v697, %v700
  %v703 = vadd.f32 %v693, %v701
  %v704 = vadd.f32 %v694, %v702
  %v705 = vsub.f32 0.0, %v703
  %v706 = vsub.f32 0.0, %v704
  %v707 = vmul.f32 %v705, 1.442695
  %v708 = vpow.pop %v707
  %v709 = vmul.f32 %v706, 1.442695
  %v710 = vpow.pop %v709
  %v711 = vadd.f32 %v708, 1.0
  %v712 = vadd.f32 %v710, 1.0
  %v713 = vrcp.pop %v711
  %v714 = vmul.f32 %v711, %v713
  %v715 = vsub.f32 1.0, %v714
  %v716 = vmul.f32 %v713, %v715
  %v717 = vadd.f32 %v713, %v716
  %vm718 = vweird.f32 %v711
  %vm719 = vweird.f32 %v713
  %vm720 = vmor %vm718, %vm719
  %v721 = vsel %vm720, %v713, %v717
  %v722 = vand.u32 2147483647, %v711
  %vm723 = vcmp.eq.f32.partialorder %v722, 8.507059e+37
  %v724 = vand.u32 %v711, 2147483648
  %v725 = vor.u32 1.1754944e-38, %v724
  %v726 = vsel %vm723, %v725, %v721
  %v727 = vmul.f32 1.0, %v726
  %v728 = vrcp.pop %v712
  %v729 = vmul.f32 %v712, %v728
  %v730 = vsub.f32 1.0, %v729
  %v731 = vmul.f32 %v728, %v730
  %v732 = vadd.f32 %v728, %v731
  %vm733 = vweird.f32 %v712
  %vm734 = vweird.f32 %v728
  %vm735 = vmor %vm733, %vm734
  %v736 = vsel %vm735, %v728, %v732
  %v737 = vand.u32 2147483647, %v712
  %vm738 = vcmp.eq.f32.partialorder %v737, 8.507059e+37
  %v739 = vand.u32 %v712, 2147483648
  %v740 = vor.u32 1.1754944e-38, %v739
  %v741 = vsel %vm738, %v740, %v736
  %v742 = vmul.f32 1.0, %v741
  %v743 = vmul.f32 %v703, %v727
  %v744 = vmul.f32 %v704, %v742
  %745 = vst [vmem:[%s5] sm:$0xff] %v743
  %746 = vst [vmem:[%s5 + $0x8] sm:$0xff] %v744
  %v747 = vperm.slane %v223, 4
  %v748 = vperm.slane %v224, 4
  %v749 = vmul.f32 %v547, %v747
  %v750 = vmul.f32 %v547, %v748
  %v751 = vadd.f32 %v32, %v749
  %v752 = vadd.f32 %v32, %v750
  %v753 = vperm.slane %v223, 5
  %v754 = vperm.slane %v224, 5
  %v755 = vmul.f32 %v557, %v753
  %v756 = vmul.f32 %v557, %v754
  %v757 = vadd.f32 %v751, %v755
  %v758 = vadd.f32 %v752, %v756
  %v759 = vperm.slane %v223, 6
  %v760 = vperm.slane %v224, 6
  %v761 = vmul.f32 %v567, %v759
  %v762 = vmul.f32 %v567, %v760
  %v763 = vadd.f32 %v757, %v761
  %v764 = vadd.f32 %v758, %v762
  %v765 = vperm.slane %v223, 7
  %v766 = vperm.slane %v224, 7
  %v767 = vmul.f32 %v577, %v765
  %v768 = vmul.f32 %v577, %v766
  %v769 = vadd.f32 %v763, %v767
  %v770 = vadd.f32 %v764, %v768
  %v771 = vperm.slane %v382, 4
  %v772 = vperm.slane %v383, 4
  %v773 = vmul.f32 %v587, %v771
  %v774 = vmul.f32 %v587, %v772
  %v775 = vadd.f32 %v769, %v773
  %v776 = vadd.f32 %v770, %v774
  %v777 = vperm.slane %v382, 5
  %v778 = vperm.slane %v383, 5
  %v779 = vmul.f32 %v597, %v777
  %v780 = vmul.f32 %v597, %v778
  %v781 = vadd.f32 %v775, %v779
  %v782 = vadd.f32 %v776, %v780
  %v783 = vperm.slane %v382, 6
  %v784 = vperm.slane %v383, 6
  %v785 = vmul.f32 %v607, %v783
  %v786 = vmul.f32 %v607, %v784
  %v787 = vadd.f32 %v781, %v785
  %v788 = vadd.f32 %v782, %v786
  %v789 = vperm.slane %v382, 7
  %v790 = vperm.slane %v383, 7
  %v791 = vmul.f32 %v617, %v789
  %v792 = vmul.f32 %v617, %v790
  %v793 = vadd.f32 %v787, %v791
  %v794 = vadd.f32 %v788, %v792
  %v795 = vperm.slane %v462, 4
  %v796 = vperm.slane %v463, 4
  %v797 = vmul.f32 %v627, %v795
  %v798 = vmul.f32 %v627, %v796
  %v799 = vadd.f32 %v793, %v797
  %v800 = vadd.f32 %v794, %v798
  %v801 = vperm.slane %v462, 5
  %v802 = vperm.slane %v463, 5
  %v803 = vmul.f32 %v637, %v801
  %v804 = vmul.f32 %v637, %v802
  %v805 = vadd.f32 %v799, %v803
  %v806 = vadd.f32 %v800, %v804
  %v807 = vperm.slane %v462, 6
  %v808 = vperm.slane %v463, 6
  %v809 = vmul.f32 %v647, %v807
  %v810 = vmul.f32 %v647, %v808
  %v811 = vadd.f32 %v805, %v809
  %v812 = vadd.f32 %v806, %v810
  %v813 = vperm.slane %v462, 7
  %v814 = vperm.slane %v463, 7
  %v815 = vmul.f32 %v657, %v813
  %v816 = vmul.f32 %v657, %v814
  %v817 = vadd.f32 %v811, %v815
  %v818 = vadd.f32 %v812, %v816
  %v819 = vperm.slane %v542, 4
  %v820 = vperm.slane %v543, 4
  %v821 = vmul.f32 %v667, %v819
  %v822 = vmul.f32 %v667, %v820
  %v823 = vadd.f32 %v817, %v821
  %v824 = vadd.f32 %v818, %v822
  %v825 = vperm.slane %v542, 5
  %v826 = vperm.slane %v543, 5
  %v827 = vmul.f32 %v677, %v825
  %v828 = vmul.f32 %v677, %v826
  %v829 = vadd.f32 %v823, %v827
  %v830 = vadd.f32 %v824, %v828
  %v831 = vperm.slane %v542, 6
  %v832 = vperm.slane %v543, 6
  %v833 = vmul.f32 %v687, %v831
  %v834 = vmul.f32 %v687, %v832
  %v835 = vadd.f32 %v829, %v833
  %v836 = vadd.f32 %v830, %v834
  %v837 = vperm.slane %v542, 7
  %v838 = vperm.slane %v543, 7
  %v839 = vmul.f32 %v697, %v837
  %v840 = vmul.f32 %v697, %v838
  %v841 = vadd.f32 %v835, %v839
  %v842 = vadd.f32 %v836, %v840
  %v843 = vsub.f32 0.0, %v841
  %v844 = vsub.f32 0.0, %v842
  %v845 = vmul.f32 %v843, 1.442695
  %v846 = vpow.pop %v845
  %v847 = vmul.f32 %v844, 1.442695
  %v848 = vpow.pop %v847
  %v849 = vadd.f32 %v846, 1.0
  %v850 = vadd.f32 %v848, 1.0
  %v851 = vrcp.pop %v849
  %v852 = vmul.f32 %v849, %v851
  %v853 = vsub.f32 1.0, %v852
  %v854 = vmul.f32 %v851, %v853
  %v855 = vadd.f32 %v851, %v854
  %vm856 = vweird.f32 %v849
  %vm857 = vweird.f32 %v851
  %vm858 = vmor %vm856, %vm857
  %v859 = vsel %vm858, %v851, %v855
  %v860 = vand.u32 2147483647, %v849
  %vm861 = vcmp.eq.f32.partialorder %v860, 8.507059e+37
  %v862 = vand.u32 %v849, 2147483648
  %v863 = vor.u32 1.1754944e-38, %v862
  %v864 = vsel %vm861, %v863, %v859
  %v865 = vmul.f32 1.0, %v864
  %v866 = vrcp.pop %v850
  %v867 = vmul.f32 %v850, %v866
  %v868 = vsub.f32 1.0, %v867
  %v869 = vmul.f32 %v866, %v868
  %v870 = vadd.f32 %v866, %v869
  %vm871 = vweird.f32 %v850
  %vm872 = vweird.f32 %v866
  %vm873 = vmor %vm871, %vm872
  %v874 = vsel %vm873, %v866, %v870
  %v875 = vand.u32 2147483647, %v850
  %vm876 = vcmp.eq.f32.partialorder %v875, 8.507059e+37
  %v877 = vand.u32 %v850, 2147483648
  %v878 = vor.u32 1.1754944e-38, %v877
  %v879 = vsel %vm876, %v878, %v874
  %v880 = vmul.f32 1.0, %v879
  %v881 = vmul.f32 %v841, %v865
  %v882 = vmul.f32 %v842, %v880
  %s883 = scalar_lea.vmem %s5, 16
  %884 = vst [vmem:[%s883] sm:$0xff] %v881
  %885 = vst [vmem:[%s883 + $0x8] sm:$0xff] %v882
  // Predicated region
  $region22: #{sppelan_forward.1} parent=0 // pred_check
    _
  $region23: #{sppelan_forward.1} parent=0 // pred_check_branch
    %887 = sbr.rel (0) target = $region25
  $region24: #{sppelan_forward.1} parent=0 // pred_region
    _
  $region25: #{sppelan_forward.1} parent=0 // pred_fallthru
    _
  // Predicated region
  $region26: #{sppelan_forward.1} parent=0 // pred_check
    _
  $region27: #{sppelan_forward.1} parent=0 // pred_check_branch
    %889 = sbr.rel (0) target = $region29
  $region28: #{sppelan_forward.1} parent=0 // pred_region
    _
  $region29: #{sppelan_forward.1} parent=0 // pred_fallthru
    _

</llo_original>
